<compile_context>
chip_gen: v5e
topology: v5e:2x2
jax: 0.10.0
libtpu: 0.0.40
codegen_flags: <defaults>
</compile_context>

<pallas_src>
import functools
import math

import jax
import jax.numpy as jnp
from jax.experimental import pallas as pl
from jax.experimental.pallas import tpu as pltpu

# ----------------- config (small shapes consistent with MoE.__init__) -----------------
HIDDEN = 32
INTERMEDIATE = 64
SHARED_INTERMEDIATE = 64   # equal to INTERMEDIATE so the shared MLP stacks as an extra expert
NUM_EXPERTS = 4
TOP_K = 2
ADD_BIAS = True
NUM_LAYERS = 2
INIT_RANGE = 0.02          # std for "normal" init, m_width = 1
BATCH = 2
SEQ = 8
DTYPE = jnp.bfloat16       # bf16 storage/operands; accumulation stays f32
TOKEN_TILE = 16            # one bf16 sublane tile; ~expected tokens/expert at toy size
                           # TODO(synk): 128 (v5e) / 256 (v6e, v7x) for production token counts


def _round_up(x: int, m: int) -> int:
    return ((x + m - 1) // m) * m


# --------------------------- single-step MoE expert-MLP kernel -------------------------
def _moe_mlp_kernel(meta_ref, xg_ref, gates_ref, x_ref,
                    wfc_ref, bfc_ref, wpj_ref, bpj_ref,
                    yr_ref, ys_ref, *, nt, tm):
    """All-weights-resident MoE expert MLP (single grid step).

    meta_ref  : SMEM (nt+1,) int32 -- [0] = #valid routed tiles, [1+t] = expert id of tile t
    xg_ref    : VMEM (P, H) bf16   -- routed tokens, sorted by expert, tile-padded per group
    gates_ref : VMEM (P, 1) f32    -- per routed-row gate (0 on padding rows)
    x_ref     : VMEM (T, H) bf16   -- raw tokens (dense shared-expert path, gate == 1)
    w*/b*_ref : VMEM stacked (E+1, ...) weights; index E = shared expert
    yr_ref    : VMEM (P, H) bf16   -- OUT: gated routed output (grouped order)
    ys_ref    : VMEM (T, H) bf16   -- OUT: shared-expert output (token order)
    """
    f32 = jnp.float32

    # ---- shared expert: dense over all tokens, static weight index (full-M MXU feed) ----
    se = wfc_ref.shape[0] - 1
    h = jnp.dot(x_ref[...], wfc_ref[se], preferred_element_type=f32) + bfc_ref[se].astype(f32)
    h = jax.nn.gelu(h, approximate=True)                         # gelu_pytorch_tanh
    y = jnp.dot(h.astype(x_ref.dtype), wpj_ref[se], preferred_element_type=f32)
    y = y + bpj_ref[se].astype(f32)
    ys_ref[...] = y.astype(ys_ref.dtype)

    # ---- routed experts: unrolled loop over token tiles, weights already in VMEM ----
    n_valid = meta_ref[0]

    def tile_body(t, carry):
        row = pl.multiple_of(t * tm, tm)

        @pl.when(t < n_valid)
        def _():
            gid = meta_ref[1 + t]                                # expert id of this tile
            xg = xg_ref[pl.ds(row, tm), :]
            hh = jnp.dot(xg, wfc_ref[gid], preferred_element_type=f32)
            hh = hh + bfc_ref[gid].astype(f32)
            hh = jax.nn.gelu(hh, approximate=True)
            yy = jnp.dot(hh.astype(xg.dtype), wpj_ref[gid], preferred_element_type=f32)
            yy = yy + bpj_ref[gid].astype(f32)
            yy = yy * gates_ref[pl.ds(row, tm), :]               # gate folded in-kernel
            yr_ref[pl.ds(row, tm), :] = yy.astype(yr_ref.dtype)

        @pl.when(t >= n_valid)                                   # pure-padding tile:
        def _():                                                 # skip matmuls, zero-fill
            yr_ref[pl.ds(row, tm), :] = jnp.zeros((tm, yr_ref.shape[1]), yr_ref.dtype)

        return carry

    jax.lax.fori_loop(0, nt, tile_body, 0, unroll=True)


def moe_expert_mlp(meta, x_grouped, gates, x_tokens, w_fc, b_fc, w_proj, b_proj, *, tm):
    # meta:      (nt+1,) int32  — scalar prefetch (SMEM): [#valid tiles, tile expert ids...]
    # x_grouped: (P, H) bf16    — routed tokens gathered/sorted by expert, tile-aligned groups
    # gates:     (P, 1) f32     — per-row gates (0 on padding rows)
    # x_tokens:  (T, H) bf16    — raw tokens for the shared expert
    # w_fc:(E+1,H,I) b_fc:(E+1,1,I) w_proj:(E+1,I,H) b_proj:(E+1,1,H), all bf16, pre-stacked
    P, H = x_grouped.shape
    T = x_tokens.shape[0]
    E1, _, I = w_fc.shape
    nt = P // tm
    kernel = functools.partial(_moe_mlp_kernel, nt=nt, tm=tm)
    return pl.pallas_call(
        kernel,
        out_shape=(jax.ShapeDtypeStruct((P, H), x_grouped.dtype),
                   jax.ShapeDtypeStruct((T, H), x_tokens.dtype)),
        grid_spec=pltpu.PrefetchScalarGridSpec(
            num_scalar_prefetch=1,
            grid=(1,),                       # single step: everything fits in VMEM at toy size
            in_specs=[
                pl.BlockSpec((P, H), lambda i, meta: (0, 0)),
                pl.BlockSpec((P, 1), lambda i, meta: (0, 0)),
                pl.BlockSpec((T, H), lambda i, meta: (0, 0)),
                pl.BlockSpec((E1, H, I), lambda i, meta: (0, 0, 0)),
                pl.BlockSpec((E1, 1, I), lambda i, meta: (0, 0, 0)),
                pl.BlockSpec((E1, I, H), lambda i, meta: (0, 0, 0)),
                pl.BlockSpec((E1, 1, H), lambda i, meta: (0, 0, 0)),
            ],
            out_specs=(
                pl.BlockSpec((P, H), lambda i, meta: (0, 0)),
                pl.BlockSpec((T, H), lambda i, meta: (0, 0)),
            ),
        ),
        compiler_params=pltpu.CompilerParams(
            dimension_semantics=("arbitrary",),
        ),
    )(meta, x_grouped, gates, x_tokens, w_fc, b_fc, w_proj, b_proj)


# ----------------------------- parameters ----------------------------------------------
def init_params(key):
    assert SHARED_INTERMEDIATE == INTERMEDIATE
    std = INIT_RANGE                      # init_method="normal", m_width=1
    std_proj = std / math.sqrt(2 * NUM_LAYERS)
    ks = jax.random.split(key, 3)
    e1 = NUM_EXPERTS + 1                  # routed experts + shared expert stacked once
    # Stored pre-transposed (in, out) and pre-stacked at init — no per-call transpose/concat.
    w_gate_t = (jax.random.normal(ks[0], (HIDDEN, NUM_EXPERTS), jnp.float32) * std).astype(DTYPE)
    w_fc = (jax.random.normal(ks[1], (e1, HIDDEN, INTERMEDIATE), jnp.float32) * std).astype(DTYPE)
    b_fc = jnp.zeros((e1, 1, INTERMEDIATE), DTYPE)            # torch init zeroes biases
    w_proj = (jax.random.normal(ks[2], (e1, INTERMEDIATE, HIDDEN), jnp.float32) * std_proj).astype(DTYPE)
    b_proj = jnp.zeros((e1, 1, HIDDEN), DTYPE)
    return {"w_gate_t": w_gate_t, "w_fc": w_fc, "b_fc": b_fc,
            "w_proj": w_proj, "b_proj": b_proj}


# ---------------------- routing + group metadata (plain XLA) ---------------------------
def _route_and_group(x, w_gate_t, tm):
    """Sort token-expert pairs by expert, pad each group to a tile multiple, and build the
    per-tile metadata [n_valid_tiles, expert_id_per_tile...].  Shared expert is NOT in this
    path (it is dense).  Padding rows inside valid tiles carry gate 0 / src 0; trailing
    all-padding tiles are skipped in-kernel via meta[0]."""
    T, _ = x.shape
    E, K = NUM_EXPERTS, TOP_K

    # router (fuses with top_k / softmax in XLA — no tiny pallas round-trip)
    logits = jnp.dot(x, w_gate_t, preferred_element_type=jnp.float32)      # (T, E) f32
    topk_vals, topk_idx = jax.lax.top_k(logits, K)                         # (T, K)
    router_weights = jax.nn.softmax(topk_vals, axis=-1)                    # (T, K) f32 gates

    expert_ids = topk_idx.reshape(-1).astype(jnp.int32)                    # (T*K,)
    gate_vals = router_weights.reshape(-1)
    src_tokens = jnp.arange(T * K, dtype=jnp.int32) // K

    order = jnp.argsort(expert_ids)
    sorted_experts = expert_ids[order]
    sorted_src = src_tokens[order]
    sorted_gates = gate_vals[order]

    counts = jnp.sum(
        (expert_ids[:, None] == jnp.arange(E, dtype=jnp.int32)[None, :]).astype(jnp.int32),
        axis=0)                                                            # (E,)
    padded_counts = ((counts + tm - 1) // tm) * tm
    padded_starts = jnp.concatenate(
        [jnp.zeros((1,), jnp.int32), jnp.cumsum(padded_counts)])[:-1]
    routed_starts = jnp.concatenate(
        [jnp.zeros((1,), jnp.int32), jnp.cumsum(counts)])[:-1]

    # static worst-case padded size; groups are tile-aligned so tiles never straddle a group
    P = _round_up(T * K + E * (tm - 1), tm)
    nt = P // tm

    # destination of every sorted routed row inside the padded buffer
    pos = padded_starts[sorted_experts] + (jnp.arange(T * K, dtype=jnp.int32)
                                           - routed_starts[sorted_experts])
    src_padded = jnp.zeros((P,), jnp.int32).at[pos].set(sorted_src)
    gates_padded = jnp.zeros((P,), jnp.float32).at[pos].set(sorted_gates)

    # per-tile expert id + number of valid tiles
    ends = jnp.cumsum(padded_counts)
    tile_starts = jnp.arange(nt, dtype=jnp.int32) * tm
    gids = jnp.minimum(jnp.searchsorted(ends, tile_starts, side="right"), E).astype(jnp.int32)
    n_valid = (jnp.sum(padded_counts) // tm).astype(jnp.int32)
    meta = jnp.concatenate([n_valid[None], gids])                          # (nt+1,) int32

    return meta, src_padded, gates_padded


# ----------------------------- full forward --------------------------------------------
@jax.jit
def moe_forward(hidden_states, params):
    B, S, H = hidden_states.shape
    x = hidden_states.reshape(-1, H)                                   # (T, H)
    T = x.shape[0]

    meta, src_padded, gates_padded = _route_and_group(x, params["w_gate_t"], TOKEN_TILE)

    # TODO(synk): at production scale gather routed rows inside the kernel (scalar-prefetched
    #             src indices + DMA) instead of materializing x_grouped in HBM.
    x_grouped = x[src_padded]                                          # (P, H) bf16

    y_routed, y_shared = moe_expert_mlp(
        meta, x_grouped, gates_padded[:, None], x,
        params["w_fc"], params["b_fc"], params["w_proj"], params["b_proj"],
        tm=TOKEN_TILE)

    # scatter-add gated routed rows back to token order (f32 accumulation via fused upcast;
    # padding rows are exact zeros), then add the dense shared-expert output.
    out = jnp.zeros((T, H), jnp.float32).at[src_padded].add(y_routed.astype(jnp.float32))
    out = out + y_shared.astype(jnp.float32)
    out = out.astype(hidden_states.dtype).reshape(B, S, H)
    # dropout(p=0) -> identity
    # TODO(synk): switch/z aux loss (bincount + all_reduce) is training-only; eval returns 0.
    return out


# ----------------------------- pure-JAX reference for sanity check ---------------------
def moe_forward_ref(hidden_states, params):
    B, S, H = hidden_states.shape
    x = hidden_states.reshape(-1, H)
    T = x.shape[0]
    logits = jnp.dot(x, params["w_gate_t"], preferred_element_type=jnp.float32)
    topk_vals, topk_idx = jax.lax.top_k(logits, TOP_K)
    rw = jax.nn.softmax(topk_vals, axis=-1)
    out = jnp.zeros((T, H), jnp.float32)
    for e in range(NUM_EXPERTS + 1):
        if e < NUM_EXPERTS:
            g = jnp.sum(rw * (topk_idx == e).astype(jnp.float32), axis=-1)
        else:
            g = jnp.ones((T,), jnp.float32)                            # shared expert
        h = jnp.dot(x, params["w_fc"][e], preferred_element_type=jnp.float32) \
            + params["b_fc"][e].astype(jnp.float32)
        h = jax.nn.gelu(h, approximate=True)
        y = jnp.dot(h.astype(x.dtype), params["w_proj"][e], preferred_element_type=jnp.float32) \
            + params["b_proj"][e].astype(jnp.float32)
        out = out + g[:, None] * y
    return out.astype(hidden_states.dtype).reshape(B, S, H)


if __name__ == "__main__":
    key = jax.random.PRNGKey(0)
    k_param, k_x = jax.random.split(key)
    params = init_params(k_param)
    hidden_states = jax.random.normal(k_x, (BATCH, SEQ, HIDDEN), jnp.float32).astype(DTYPE)

    out = jax.block_until_ready(moe_forward(hidden_states, params))
    ref = jax.block_until_ready(moe_forward_ref(hidden_states, params))

    assert out.shape == (BATCH, SEQ, HIDDEN)
    assert out.dtype == hidden_states.dtype
    max_err = jnp.max(jnp.abs(out.astype(jnp.float32) - ref.astype(jnp.float32)))
    assert jnp.allclose(out.astype(jnp.float32), ref.astype(jnp.float32),
                        atol=1e-2, rtol=5e-2), f"mismatch vs reference (max abs err {max_err})"

    print("KERNEL_OK")
</pallas_src>

<mosaic_0001>
module attributes {stable_mosaic.version = 11 : i64} {
  func.func @_moe_mlp_kernel(%arg0: i32, %arg1: memref<7xi32, #tpu.memory_space<smem>>, %arg2: memref<96x32xbf16, #tpu.memory_space<vmem>>, %arg3: memref<96x1xf32, #tpu.memory_space<vmem>>, %arg4: memref<16x32xbf16, #tpu.memory_space<vmem>>, %arg5: memref<5x32x64xbf16, #tpu.memory_space<vmem>>, %arg6: memref<5x1x64xbf16, #tpu.memory_space<vmem>>, %arg7: memref<5x64x32xbf16, #tpu.memory_space<vmem>>, %arg8: memref<5x1x32xbf16, #tpu.memory_space<vmem>>, %arg9: memref<96x32xbf16, #tpu.memory_space<vmem>>, %arg10: memref<16x32xbf16, #tpu.memory_space<vmem>>) attributes {dimension_semantics = [#tpu.dimension_semantics<arbitrary>], iteration_bounds = array<i64: 1>, scalar_prefetch = 1 : i64, scratch_operands = 0 : i64, tpu.core_type = #tpu.core_type<tc>, window_params = [{pipeline_mode = #tpu.pipeline_mode<synchronous>, transform_indices = @transform_0, window_bounds = array<i64: 96, 32>}, {pipeline_mode = #tpu.pipeline_mode<synchronous>, transform_indices = @transform_1, window_bounds = array<i64: 96, 1>}, {pipeline_mode = #tpu.pipeline_mode<synchronous>, transform_indices = @transform_2, window_bounds = array<i64: 16, 32>}, {pipeline_mode = #tpu.pipeline_mode<synchronous>, transform_indices = @transform_3, window_bounds = array<i64: 5, 32, 64>}, {pipeline_mode = #tpu.pipeline_mode<synchronous>, transform_indices = @transform_4, window_bounds = array<i64: 5, 1, 64>}, {pipeline_mode = #tpu.pipeline_mode<synchronous>, transform_indices = @transform_5, window_bounds = array<i64: 5, 64, 32>}, {pipeline_mode = #tpu.pipeline_mode<synchronous>, transform_indices = @transform_6, window_bounds = array<i64: 5, 1, 32>}, {pipeline_mode = #tpu.pipeline_mode<synchronous>, transform_indices = @transform_7, window_bounds = array<i64: 96, 32>}, {pipeline_mode = #tpu.pipeline_mode<synchronous>, transform_indices = @transform_8, window_bounds = array<i64: 16, 32>}]} {
    %c0 = arith.constant 0 : index
    %c0_0 = arith.constant 0 : index
    %0 = vector.load %arg4[%c0, %c0_0] : memref<16x32xbf16, #tpu.memory_space<vmem>>, vector<16x32xbf16>
    %c4 = arith.constant 4 : index
    %c0_1 = arith.constant 0 : index
    %c0_2 = arith.constant 0 : index
    %1 = vector.load %arg5[%c4, %c0_1, %c0_2] : memref<5x32x64xbf16, #tpu.memory_space<vmem>>, vector<1x32x64xbf16>
    %2 = vector.shape_cast %1 : vector<1x32x64xbf16> to vector<32x64xbf16>
    %cst = arith.constant dense<0.000000e+00> : vector<16x64xf32>
    %3 = tpu.matmul %0, %2, %cst {dimension_numbers = #tpu.dot_dimension_numbers<[1], [0], [0], [1], [0, 0, 1, 1], [], []>} : vector<16x32xbf16>, vector<32x64xbf16>, vector<16x64xf32> -> vector<16x64xf32>
    %c4_3 = arith.constant 4 : index
    %c0_4 = arith.constant 0 : index
    %c0_5 = arith.constant 0 : index
    %4 = vector.load %arg6[%c4_3, %c0_4, %c0_5] : memref<5x1x64xbf16, #tpu.memory_space<vmem>>, vector<1x1x64xbf16>
    %5 = vector.shape_cast %4 : vector<1x1x64xbf16> to vector<1x64xbf16>
    %6 = arith.extf %5 : vector<1x64xbf16> to vector<1x64xf32>
    %7 = vector.broadcast %6 : vector<1x64xf32> to vector<16x64xf32>
    %8 = arith.addf %3, %7 : vector<16x64xf32>
    %9 = arith.mulf %8, %8 : vector<16x64xf32>
    %10 = arith.mulf %8, %9 : vector<16x64xf32>
    %cst_6 = arith.constant 4.471500e-02 : f32
    %11 = vector.broadcast %cst_6 : f32 to vector<16x64xf32>
    %12 = arith.mulf %11, %10 : vector<16x64xf32>
    %13 = arith.addf %8, %12 : vector<16x64xf32>
    %cst_7 = arith.constant 0.797884583 : f32
    %14 = vector.broadcast %cst_7 : f32 to vector<16x64xf32>
    %15 = arith.mulf %14, %13 : vector<16x64xf32>
    %16 = math.tanh %15 : vector<16x64xf32>
    %cst_8 = arith.constant 1.000000e+00 : f32
    %17 = vector.broadcast %cst_8 : f32 to vector<16x64xf32>
    %18 = arith.addf %17, %16 : vector<16x64xf32>
    %cst_9 = arith.constant 5.000000e-01 : f32
    %19 = vector.broadcast %cst_9 : f32 to vector<16x64xf32>
    %20 = arith.mulf %19, %18 : vector<16x64xf32>
    %21 = arith.mulf %8, %20 : vector<16x64xf32>
    %22 = arith.truncf %21 : vector<16x64xf32> to vector<16x64xbf16>
    %c4_10 = arith.constant 4 : index
    %c0_11 = arith.constant 0 : index
    %c0_12 = arith.constant 0 : index
    %23 = vector.load %arg7[%c4_10, %c0_11, %c0_12] : memref<5x64x32xbf16, #tpu.memory_space<vmem>>, vector<1x64x32xbf16>
    %24 = vector.shape_cast %23 : vector<1x64x32xbf16> to vector<64x32xbf16>
    %cst_13 = arith.constant dense<0.000000e+00> : vector<16x32xf32>
    %25 = tpu.matmul %22, %24, %cst_13 {dimension_numbers = #tpu.dot_dimension_numbers<[1], [0], [0], [1], [0, 0, 1, 1], [], []>} : vector<16x64xbf16>, vector<64x32xbf16>, vector<16x32xf32> -> vector<16x32xf32>
    %c4_14 = arith.constant 4 : index
    %c0_15 = arith.constant 0 : index
    %c0_16 = arith.constant 0 : index
    %26 = vector.load %arg8[%c4_14, %c0_15, %c0_16] : memref<5x1x32xbf16, #tpu.memory_space<vmem>>, vector<1x1x32xbf16>
    %27 = vector.shape_cast %26 : vector<1x1x32xbf16> to vector<1x32xbf16>
    %28 = arith.extf %27 : vector<1x32xbf16> to vector<1x32xf32>
    %29 = vector.broadcast %28 : vector<1x32xf32> to vector<16x32xf32>
    %30 = arith.addf %25, %29 : vector<16x32xf32>
    %31 = arith.truncf %30 : vector<16x32xf32> to vector<16x32xbf16>
    %c0_17 = arith.constant 0 : index
    %c0_18 = arith.constant 0 : index
    %32 = vector.load %arg10[%c0_17, %c0_18] : memref<16x32xbf16, #tpu.memory_space<vmem>>, vector<16x32xbf16>
    tpu.vector_store %arg10[%c0_17, %c0_18], %31 {strides = array<i32>} : memref<16x32xbf16, #tpu.memory_space<vmem>>, vector<16x32xbf16>,
    %c0_19 = arith.constant 0 : index
    %33 = memref.load %arg1[%c0_19] : memref<7xi32, #tpu.memory_space<smem>>
    %c0_i32 = arith.constant 0 : i32
    %c16_i32 = arith.constant 16 : i32
    %34 = arith.muli %c0_i32, %c16_i32 : i32
    %35 = tpu.assume_multiple %34, 16 : i32
    %36 = arith.cmpi slt, %c0_i32, %33 : i32
    %37 = arith.extui %36 : i1 to i32
    %c0_i32_20 = arith.constant 0 : i32
    %38 = arith.cmpi ne, %37, %c0_i32_20 : i32
    scf.if %38 {
      %c1_i32_37 = arith.constant 1 : i32
      %82 = arith.addi %c1_i32_37, %c0_i32 : i32
      %83 = arith.index_cast %82 : i32 to index
      %84 = memref.load %arg1[%83] : memref<7xi32, #tpu.memory_space<smem>>
      %85 = arith.index_cast %35 : i32 to index
      %c0_38 = arith.constant 0 : index
      %86 = vector.load %arg2[%85, %c0_38] : memref<96x32xbf16, #tpu.memory_space<vmem>>, vector<16x32xbf16>
      %87 = arith.index_cast %84 : i32 to index
      %c0_39 = arith.constant 0 : index
      %c0_40 = arith.constant 0 : index
      %88 = vector.load %arg5[%87, %c0_39, %c0_40] : memref<5x32x64xbf16, #tpu.memory_space<vmem>>, vector<1x32x64xbf16>
      %89 = vector.shape_cast %88 : vector<1x32x64xbf16> to vector<32x64xbf16>
      %cst_41 = arith.constant dense<0.000000e+00> : vector<16x64xf32>
      %90 = tpu.matmul %86, %89, %cst_41 {dimension_numbers = #tpu.dot_dimension_numbers<[1], [0], [0], [1], [0, 0, 1, 1], [], []>} : vector<16x32xbf16>, vector<32x64xbf16>, vector<16x64xf32> -> vector<16x64xf32>
      %91 = arith.index_cast %84 : i32 to index
      %c0_42 = arith.constant 0 : index
      %c0_43 = arith.constant 0 : index
      %92 = vector.load %arg6[%91, %c0_42, %c0_43] : memref<5x1x64xbf16, #tpu.memory_space<vmem>>, vector<1x1x64xbf16>
      %93 = vector.shape_cast %92 : vector<1x1x64xbf16> to vector<1x64xbf16>
      %94 = arith.extf %93 : vector<1x64xbf16> to vector<1x64xf32>
      %95 = vector.broadcast %94 : vector<1x64xf32> to vector<16x64xf32>
      %96 = arith.addf %90, %95 : vector<16x64xf32>
      %97 = arith.mulf %96, %96 : vector<16x64xf32>
      %98 = arith.mulf %96, %97 : vector<16x64xf32>
      %cst_44 = arith.constant 4.471500e-02 : f32
      %99 = vector.broadcast %cst_44 : f32 to vector<16x64xf32>
      %100 = arith.mulf %99, %98 : vector<16x64xf32>
      %101 = arith.addf %96, %100 : vector<16x64xf32>
      %cst_45 = arith.constant 0.797884583 : f32
      %102 = vector.broadcast %cst_45 : f32 to vector<16x64xf32>
      %103 = arith.mulf %102, %101 : vector<16x64xf32>
      %104 = math.tanh %103 : vector<16x64xf32>
      %cst_46 = arith.constant 1.000000e+00 : f32
      %105 = vector.broadcast %cst_46 : f32 to vector<16x64xf32>
      %106 = arith.addf %105, %104 : vector<16x64xf32>
      %cst_47 = arith.constant 5.000000e-01 : f32
      %107 = vector.broadcast %cst_47 : f32 to vector<16x64xf32>
      %108 = arith.mulf %107, %106 : vector<16x64xf32>
      %109 = arith.mulf %96, %108 : vector<16x64xf32>
      %110 = arith.truncf %109 : vector<16x64xf32> to vector<16x64xbf16>
      %111 = arith.index_cast %84 : i32 to index
      %c0_48 = arith.constant 0 : index
      %c0_49 = arith.constant 0 : index
      %112 = vector.load %arg7[%111, %c0_48, %c0_49] : memref<5x64x32xbf16, #tpu.memory_space<vmem>>, vector<1x64x32xbf16>
      %113 = vector.shape_cast %112 : vector<1x64x32xbf16> to vector<64x32xbf16>
      %cst_50 = arith.constant dense<0.000000e+00> : vector<16x32xf32>
      %114 = tpu.matmul %110, %113, %cst_50 {dimension_numbers = #tpu.dot_dimension_numbers<[1], [0], [0], [1], [0, 0, 1, 1], [], []>} : vector<16x64xbf16>, vector<64x32xbf16>, vector<16x32xf32> -> vector<16x32xf32>
      %115 = arith.index_cast %84 : i32 to index
      %c0_51 = arith.constant 0 : index
      %c0_52 = arith.constant 0 : index
      %116 = vector.load %arg8[%115, %c0_51, %c0_52] : memref<5x1x32xbf16, #tpu.memory_space<vmem>>, vector<1x1x32xbf16>
      %117 = vector.shape_cast %116 : vector<1x1x32xbf16> to vector<1x32xbf16>
      %118 = arith.extf %117 : vector<1x32xbf16> to vector<1x32xf32>
      %119 = vector.broadcast %118 : vector<1x32xf32> to vector<16x32xf32>
      %120 = arith.addf %114, %119 : vector<16x32xf32>
      %121 = arith.index_cast %35 : i32 to index
      %c0_53 = arith.constant 0 : index
      %122 = vector.load %arg3[%121, %c0_53] : memref<96x1xf32, #tpu.memory_space<vmem>>, vector<16x1xf32>
      %123 = vector.broadcast %122 : vector<16x1xf32> to vector<16x32xf32>
      %124 = arith.mulf %120, %123 : vector<16x32xf32>
      %125 = arith.truncf %124 : vector<16x32xf32> to vector<16x32xbf16>
      %126 = arith.index_cast %35 : i32 to index
      %c0_54 = arith.constant 0 : index
      %127 = vector.load %arg9[%126, %c0_54] : memref<96x32xbf16, #tpu.memory_space<vmem>>, vector<16x32xbf16>
      tpu.vector_store %arg9[%126, %c0_54], %125 {strides = array<i32>} : memref<96x32xbf16, #tpu.memory_space<vmem>>, vector<16x32xbf16>,
    } else {
    }
    %39 = arith.cmpi sge, %c0_i32, %33 : i32
    %40 = arith.extui %39 : i1 to i32
    %c0_i32_21 = arith.constant 0 : i32
    %41 = arith.cmpi ne, %40, %c0_i32_21 : i32
    scf.if %41 {
      %cst_37 = arith.constant 0.000000e+00 : bf16
      %82 = vector.broadcast %cst_37 : bf16 to vector<16x32xbf16>
      %83 = arith.index_cast %35 : i32 to index
      %c0_38 = arith.constant 0 : index
      %84 = vector.load %arg9[%83, %c0_38] : memref<96x32xbf16, #tpu.memory_space<vmem>>, vector<16x32xbf16>
      tpu.vector_store %arg9[%83, %c0_38], %82 {strides = array<i32>} : memref<96x32xbf16, #tpu.memory_space<vmem>>, vector<16x32xbf16>,
    } else {
    }
    %c1_i32 = arith.constant 1 : i32
    %c16_i32_22 = arith.constant 16 : i32
    %42 = arith.muli %c1_i32, %c16_i32_22 : i32
    %43 = tpu.assume_multiple %42, 16 : i32
    %44 = arith.cmpi slt, %c1_i32, %33 : i32
    %45 = arith.extui %44 : i1 to i32
    %c0_i32_23 = arith.constant 0 : i32
    %46 = arith.cmpi ne, %45, %c0_i32_23 : i32
    scf.if %46 {
      %c1_i32_37 = arith.constant 1 : i32
      %82 = arith.addi %c1_i32_37, %c1_i32 : i32
      %83 = arith.index_cast %82 : i32 to index
      %84 = memref.load %arg1[%83] : memref<7xi32, #tpu.memory_space<smem>>
      %85 = arith.index_cast %43 : i32 to index
      %c0_38 = arith.constant 0 : index
      %86 = vector.load %arg2[%85, %c0_38] : memref<96x32xbf16, #tpu.memory_space<vmem>>, vector<16x32xbf16>
      %87 = arith.index_cast %84 : i32 to index
      %c0_39 = arith.constant 0 : index
      %c0_40 = arith.constant 0 : index
      %88 = vector.load %arg5[%87, %c0_39, %c0_40] : memref<5x32x64xbf16, #tpu.memory_space<vmem>>, vector<1x32x64xbf16>
      %89 = vector.shape_cast %88 : vector<1x32x64xbf16> to vector<32x64xbf16>
      %cst_41 = arith.constant dense<0.000000e+00> : vector<16x64xf32>
      %90 = tpu.matmul %86, %89, %cst_41 {dimension_numbers = #tpu.dot_dimension_numbers<[1], [0], [0], [1], [0, 0, 1, 1], [], []>} : vector<16x32xbf16>, vector<32x64xbf16>, vector<16x64xf32> -> vector<16x64xf32>
      %91 = arith.index_cast %84 : i32 to index
      %c0_42 = arith.constant 0 : index
      %c0_43 = arith.constant 0 : index
      %92 = vector.load %arg6[%91, %c0_42, %c0_43] : memref<5x1x64xbf16, #tpu.memory_space<vmem>>, vector<1x1x64xbf16>
      %93 = vector.shape_cast %92 : vector<1x1x64xbf16> to vector<1x64xbf16>
      %94 = arith.extf %93 : vector<1x64xbf16> to vector<1x64xf32>
      %95 = vector.broadcast %94 : vector<1x64xf32> to vector<16x64xf32>
      %96 = arith.addf %90, %95 : vector<16x64xf32>
      %97 = arith.mulf %96, %96 : vector<16x64xf32>
      %98 = arith.mulf %96, %97 : vector<16x64xf32>
      %cst_44 = arith.constant 4.471500e-02 : f32
      %99 = vector.broadcast %cst_44 : f32 to vector<16x64xf32>
      %100 = arith.mulf %99, %98 : vector<16x64xf32>
      %101 = arith.addf %96, %100 : vector<16x64xf32>
      %cst_45 = arith.constant 0.797884583 : f32
      %102 = vector.broadcast %cst_45 : f32 to vector<16x64xf32>
      %103 = arith.mulf %102, %101 : vector<16x64xf32>
      %104 = math.tanh %103 : vector<16x64xf32>
      %cst_46 = arith.constant 1.000000e+00 : f32
      %105 = vector.broadcast %cst_46 : f32 to vector<16x64xf32>
      %106 = arith.addf %105, %104 : vector<16x64xf32>
      %cst_47 = arith.constant 5.000000e-01 : f32
      %107 = vector.broadcast %cst_47 : f32 to vector<16x64xf32>
      %108 = arith.mulf %107, %106 : vector<16x64xf32>
      %109 = arith.mulf %96, %108 : vector<16x64xf32>
      %110 = arith.truncf %109 : vector<16x64xf32> to vector<16x64xbf16>
      %111 = arith.index_cast %84 : i32 to index
      %c0_48 = arith.constant 0 : index
      %c0_49 = arith.constant 0 : index
      %112 = vector.load %arg7[%111, %c0_48, %c0_49] : memref<5x64x32xbf16, #tpu.memory_space<vmem>>, vector<1x64x32xbf16>
      %113 = vector.shape_cast %112 : vector<1x64x32xbf16> to vector<64x32xbf16>
      %cst_50 = arith.constant dense<0.000000e+00> : vector<16x32xf32>
      %114 = tpu.matmul %110, %113, %cst_50 {dimension_numbers = #tpu.dot_dimension_numbers<[1], [0], [0], [1], [0, 0, 1, 1], [], []>} : vector<16x64xbf16>, vector<64x32xbf16>, vector<16x32xf32> -> vector<16x32xf32>
      %115 = arith.index_cast %84 : i32 to index
      %c0_51 = arith.constant 0 : index
      %c0_52 = arith.constant 0 : index
      %116 = vector.load %arg8[%115, %c0_51, %c0_52] : memref<5x1x32xbf16, #tpu.memory_space<vmem>>, vector<1x1x32xbf16>
      %117 = vector.shape_cast %116 : vector<1x1x32xbf16> to vector<1x32xbf16>
      %118 = arith.extf %117 : vector<1x32xbf16> to vector<1x32xf32>
      %119 = vector.broadcast %118 : vector<1x32xf32> to vector<16x32xf32>
      %120 = arith.addf %114, %119 : vector<16x32xf32>
      %121 = arith.index_cast %43 : i32 to index
      %c0_53 = arith.constant 0 : index
      %122 = vector.load %arg3[%121, %c0_53] : memref<96x1xf32, #tpu.memory_space<vmem>>, vector<16x1xf32>
      %123 = vector.broadcast %122 : vector<16x1xf32> to vector<16x32xf32>
      %124 = arith.mulf %120, %123 : vector<16x32xf32>
      %125 = arith.truncf %124 : vector<16x32xf32> to vector<16x32xbf16>
      %126 = arith.index_cast %43 : i32 to index
      %c0_54 = arith.constant 0 : index
      %127 = vector.load %arg9[%126, %c0_54] : memref<96x32xbf16, #tpu.memory_space<vmem>>, vector<16x32xbf16>
      tpu.vector_store %arg9[%126, %c0_54], %125 {strides = array<i32>} : memref<96x32xbf16, #tpu.memory_space<vmem>>, vector<16x32xbf16>,
    } else {
    }
    %47 = arith.cmpi sge, %c1_i32, %33 : i32
    %48 = arith.extui %47 : i1 to i32
    %c0_i32_24 = arith.constant 0 : i32
    %49 = arith.cmpi ne, %48, %c0_i32_24 : i32
    scf.if %49 {
      %cst_37 = arith.constant 0.000000e+00 : bf16
      %82 = vector.broadcast %cst_37 : bf16 to vector<16x32xbf16>
      %83 = arith.index_cast %43 : i32 to index
      %c0_38 = arith.constant 0 : index
      %84 = vector.load %arg9[%83, %c0_38] : memref<96x32xbf16, #tpu.memory_space<vmem>>, vector<16x32xbf16>
      tpu.vector_store %arg9[%83, %c0_38], %82 {strides = array<i32>} : memref<96x32xbf16, #tpu.memory_space<vmem>>, vector<16x32xbf16>,
    } else {
    }
    %c2_i32 = arith.constant 2 : i32
    %c16_i32_25 = arith.constant 16 : i32
    %50 = arith.muli %c2_i32, %c16_i32_25 : i32
    %51 = tpu.assume_multiple %50, 16 : i32
    %52 = arith.cmpi slt, %c2_i32, %33 : i32
    %53 = arith.extui %52 : i1 to i32
    %c0_i32_26 = arith.constant 0 : i32
    %54 = arith.cmpi ne, %53, %c0_i32_26 : i32
    scf.if %54 {
      %c1_i32_37 = arith.constant 1 : i32
      %82 = arith.addi %c1_i32_37, %c2_i32 : i32
      %83 = arith.index_cast %82 : i32 to index
      %84 = memref.load %arg1[%83] : memref<7xi32, #tpu.memory_space<smem>>
      %85 = arith.index_cast %51 : i32 to index
      %c0_38 = arith.constant 0 : index
      %86 = vector.load %arg2[%85, %c0_38] : memref<96x32xbf16, #tpu.memory_space<vmem>>, vector<16x32xbf16>
      %87 = arith.index_cast %84 : i32 to index
      %c0_39 = arith.constant 0 : index
      %c0_40 = arith.constant 0 : index
      %88 = vector.load %arg5[%87, %c0_39, %c0_40] : memref<5x32x64xbf16, #tpu.memory_space<vmem>>, vector<1x32x64xbf16>
      %89 = vector.shape_cast %88 : vector<1x32x64xbf16> to vector<32x64xbf16>
      %cst_41 = arith.constant dense<0.000000e+00> : vector<16x64xf32>
      %90 = tpu.matmul %86, %89, %cst_41 {dimension_numbers = #tpu.dot_dimension_numbers<[1], [0], [0], [1], [0, 0, 1, 1], [], []>} : vector<16x32xbf16>, vector<32x64xbf16>, vector<16x64xf32> -> vector<16x64xf32>
      %91 = arith.index_cast %84 : i32 to index
      %c0_42 = arith.constant 0 : index
      %c0_43 = arith.constant 0 : index
      %92 = vector.load %arg6[%91, %c0_42, %c0_43] : memref<5x1x64xbf16, #tpu.memory_space<vmem>>, vector<1x1x64xbf16>
      %93 = vector.shape_cast %92 : vector<1x1x64xbf16> to vector<1x64xbf16>
      %94 = arith.extf %93 : vector<1x64xbf16> to vector<1x64xf32>
      %95 = vector.broadcast %94 : vector<1x64xf32> to vector<16x64xf32>
      %96 = arith.addf %90, %95 : vector<16x64xf32>
      %97 = arith.mulf %96, %96 : vector<16x64xf32>
      %98 = arith.mulf %96, %97 : vector<16x64xf32>
      %cst_44 = arith.constant 4.471500e-02 : f32
      %99 = vector.broadcast %cst_44 : f32 to vector<16x64xf32>
      %100 = arith.mulf %99, %98 : vector<16x64xf32>
      %101 = arith.addf %96, %100 : vector<16x64xf32>
      %cst_45 = arith.constant 0.797884583 : f32
      %102 = vector.broadcast %cst_45 : f32 to vector<16x64xf32>
      %103 = arith.mulf %102, %101 : vector<16x64xf32>
      %104 = math.tanh %103 : vector<16x64xf32>
      %cst_46 = arith.constant 1.000000e+00 : f32
      %105 = vector.broadcast %cst_46 : f32 to vector<16x64xf32>
      %106 = arith.addf %105, %104 : vector<16x64xf32>
      %cst_47 = arith.constant 5.000000e-01 : f32
      %107 = vector.broadcast %cst_47 : f32 to vector<16x64xf32>
      %108 = arith.mulf %107, %106 : vector<16x64xf32>
      %109 = arith.mulf %96, %108 : vector<16x64xf32>
      %110 = arith.truncf %109 : vector<16x64xf32> to vector<16x64xbf16>
      %111 = arith.index_cast %84 : i32 to index
      %c0_48 = arith.constant 0 : index
      %c0_49 = arith.constant 0 : index
      %112 = vector.load %arg7[%111, %c0_48, %c0_49] : memref<5x64x32xbf16, #tpu.memory_space<vmem>>, vector<1x64x32xbf16>
      %113 = vector.shape_cast %112 : vector<1x64x32xbf16> to vector<64x32xbf16>
      %cst_50 = arith.constant dense<0.000000e+00> : vector<16x32xf32>
      %114 = tpu.matmul %110, %113, %cst_50 {dimension_numbers = #tpu.dot_dimension_numbers<[1], [0], [0], [1], [0, 0, 1, 1], [], []>} : vector<16x64xbf16>, vector<64x32xbf16>, vector<16x32xf32> -> vector<16x32xf32>
      %115 = arith.index_cast %84 : i32 to index
      %c0_51 = arith.constant 0 : index
      %c0_52 = arith.constant 0 : index
      %116 = vector.load %arg8[%115, %c0_51, %c0_52] : memref<5x1x32xbf16, #tpu.memory_space<vmem>>, vector<1x1x32xbf16>
      %117 = vector.shape_cast %116 : vector<1x1x32xbf16> to vector<1x32xbf16>
      %118 = arith.extf %117 : vector<1x32xbf16> to vector<1x32xf32>
      %119 = vector.broadcast %118 : vector<1x32xf32> to vector<16x32xf32>
      %120 = arith.addf %114, %119 : vector<16x32xf32>
      %121 = arith.index_cast %51 : i32 to index
      %c0_53 = arith.constant 0 : index
      %122 = vector.load %arg3[%121, %c0_53] : memref<96x1xf32, #tpu.memory_space<vmem>>, vector<16x1xf32>
      %123 = vector.broadcast %122 : vector<16x1xf32> to vector<16x32xf32>
      %124 = arith.mulf %120, %123 : vector<16x32xf32>
      %125 = arith.truncf %124 : vector<16x32xf32> to vector<16x32xbf16>
      %126 = arith.index_cast %51 : i32 to index
      %c0_54 = arith.constant 0 : index
      %127 = vector.load %arg9[%126, %c0_54] : memref<96x32xbf16, #tpu.memory_space<vmem>>, vector<16x32xbf16>
      tpu.vector_store %arg9[%126, %c0_54], %125 {strides = array<i32>} : memref<96x32xbf16, #tpu.memory_space<vmem>>, vector<16x32xbf16>,
    } else {
    }
    %55 = arith.cmpi sge, %c2_i32, %33 : i32
    %56 = arith.extui %55 : i1 to i32
    %c0_i32_27 = arith.constant 0 : i32
    %57 = arith.cmpi ne, %56, %c0_i32_27 : i32
    scf.if %57 {
      %cst_37 = arith.constant 0.000000e+00 : bf16
      %82 = vector.broadcast %cst_37 : bf16 to vector<16x32xbf16>
      %83 = arith.index_cast %51 : i32 to index
      %c0_38 = arith.constant 0 : index
      %84 = vector.load %arg9[%83, %c0_38] : memref<96x32xbf16, #tpu.memory_space<vmem>>, vector<16x32xbf16>
      tpu.vector_store %arg9[%83, %c0_38], %82 {strides = array<i32>} : memref<96x32xbf16, #tpu.memory_space<vmem>>, vector<16x32xbf16>,
    } else {
    }
    %c3_i32 = arith.constant 3 : i32
    %c16_i32_28 = arith.constant 16 : i32
    %58 = arith.muli %c3_i32, %c16_i32_28 : i32
    %59 = tpu.assume_multiple %58, 16 : i32
    %60 = arith.cmpi slt, %c3_i32, %33 : i32
    %61 = arith.extui %60 : i1 to i32
    %c0_i32_29 = arith.constant 0 : i32
    %62 = arith.cmpi ne, %61, %c0_i32_29 : i32
    scf.if %62 {
      %c1_i32_37 = arith.constant 1 : i32
      %82 = arith.addi %c1_i32_37, %c3_i32 : i32
      %83 = arith.index_cast %82 : i32 to index
      %84 = memref.load %arg1[%83] : memref<7xi32, #tpu.memory_space<smem>>
      %85 = arith.index_cast %59 : i32 to index
      %c0_38 = arith.constant 0 : index
      %86 = vector.load %arg2[%85, %c0_38] : memref<96x32xbf16, #tpu.memory_space<vmem>>, vector<16x32xbf16>
      %87 = arith.index_cast %84 : i32 to index
      %c0_39 = arith.constant 0 : index
      %c0_40 = arith.constant 0 : index
      %88 = vector.load %arg5[%87, %c0_39, %c0_40] : memref<5x32x64xbf16, #tpu.memory_space<vmem>>, vector<1x32x64xbf16>
      %89 = vector.shape_cast %88 : vector<1x32x64xbf16> to vector<32x64xbf16>
      %cst_41 = arith.constant dense<0.000000e+00> : vector<16x64xf32>
      %90 = tpu.matmul %86, %89, %cst_41 {dimension_numbers = #tpu.dot_dimension_numbers<[1], [0], [0], [1], [0, 0, 1, 1], [], []>} : vector<16x32xbf16>, vector<32x64xbf16>, vector<16x64xf32> -> vector<16x64xf32>
      %91 = arith.index_cast %84 : i32 to index
      %c0_42 = arith.constant 0 : index
      %c0_43 = arith.constant 0 : index
      %92 = vector.load %arg6[%91, %c0_42, %c0_43] : memref<5x1x64xbf16, #tpu.memory_space<vmem>>, vector<1x1x64xbf16>
      %93 = vector.shape_cast %92 : vector<1x1x64xbf16> to vector<1x64xbf16>
      %94 = arith.extf %93 : vector<1x64xbf16> to vector<1x64xf32>
      %95 = vector.broadcast %94 : vector<1x64xf32> to vector<16x64xf32>
      %96 = arith.addf %90, %95 : vector<16x64xf32>
      %97 = arith.mulf %96, %96 : vector<16x64xf32>
      %98 = arith.mulf %96, %97 : vector<16x64xf32>
      %cst_44 = arith.constant 4.471500e-02 : f32
      %99 = vector.broadcast %cst_44 : f32 to vector<16x64xf32>
      %100 = arith.mulf %99, %98 : vector<16x64xf32>
      %101 = arith.addf %96, %100 : vector<16x64xf32>
      %cst_45 = arith.constant 0.797884583 : f32
      %102 = vector.broadcast %cst_45 : f32 to vector<16x64xf32>
      %103 = arith.mulf %102, %101 : vector<16x64xf32>
      %104 = math.tanh %103 : vector<16x64xf32>
      %cst_46 = arith.constant 1.000000e+00 : f32
      %105 = vector.broadcast %cst_46 : f32 to vector<16x64xf32>
      %106 = arith.addf %105, %104 : vector<16x64xf32>
      %cst_47 = arith.constant 5.000000e-01 : f32
      %107 = vector.broadcast %cst_47 : f32 to vector<16x64xf32>
      %108 = arith.mulf %107, %106 : vector<16x64xf32>
      %109 = arith.mulf %96, %108 : vector<16x64xf32>
      %110 = arith.truncf %109 : vector<16x64xf32> to vector<16x64xbf16>
      %111 = arith.index_cast %84 : i32 to index
      %c0_48 = arith.constant 0 : index
      %c0_49 = arith.constant 0 : index
      %112 = vector.load %arg7[%111, %c0_48, %c0_49] : memref<5x64x32xbf16, #tpu.memory_space<vmem>>, vector<1x64x32xbf16>
      %113 = vector.shape_cast %112 : vector<1x64x32xbf16> to vector<64x32xbf16>
      %cst_50 = arith.constant dense<0.000000e+00> : vector<16x32xf32>
      %114 = tpu.matmul %110, %113, %cst_50 {dimension_numbers = #tpu.dot_dimension_numbers<[1], [0], [0], [1], [0, 0, 1, 1], [], []>} : vector<16x64xbf16>, vector<64x32xbf16>, vector<16x32xf32> -> vector<16x32xf32>
      %115 = arith.index_cast %84 : i32 to index
      %c0_51 = arith.constant 0 : index
      %c0_52 = arith.constant 0 : index
      %116 = vector.load %arg8[%115, %c0_51, %c0_52] : memref<5x1x32xbf16, #tpu.memory_space<vmem>>, vector<1x1x32xbf16>
      %117 = vector.shape_cast %116 : vector<1x1x32xbf16> to vector<1x32xbf16>
      %118 = arith.extf %117 : vector<1x32xbf16> to vector<1x32xf32>
      %119 = vector.broadcast %118 : vector<1x32xf32> to vector<16x32xf32>
      %120 = arith.addf %114, %119 : vector<16x32xf32>
      %121 = arith.index_cast %59 : i32 to index
      %c0_53 = arith.constant 0 : index
      %122 = vector.load %arg3[%121, %c0_53] : memref<96x1xf32, #tpu.memory_space<vmem>>, vector<16x1xf32>
      %123 = vector.broadcast %122 : vector<16x1xf32> to vector<16x32xf32>
      %124 = arith.mulf %120, %123 : vector<16x32xf32>
      %125 = arith.truncf %124 : vector<16x32xf32> to vector<16x32xbf16>
      %126 = arith.index_cast %59 : i32 to index
      %c0_54 = arith.constant 0 : index
      %127 = vector.load %arg9[%126, %c0_54] : memref<96x32xbf16, #tpu.memory_space<vmem>>, vector<16x32xbf16>
      tpu.vector_store %arg9[%126, %c0_54], %125 {strides = array<i32>} : memref<96x32xbf16, #tpu.memory_space<vmem>>, vector<16x32xbf16>,
    } else {
    }
    %63 = arith.cmpi sge, %c3_i32, %33 : i32
    %64 = arith.extui %63 : i1 to i32
    %c0_i32_30 = arith.constant 0 : i32
    %65 = arith.cmpi ne, %64, %c0_i32_30 : i32
    scf.if %65 {
      %cst_37 = arith.constant 0.000000e+00 : bf16
      %82 = vector.broadcast %cst_37 : bf16 to vector<16x32xbf16>
      %83 = arith.index_cast %59 : i32 to index
      %c0_38 = arith.constant 0 : index
      %84 = vector.load %arg9[%83, %c0_38] : memref<96x32xbf16, #tpu.memory_space<vmem>>, vector<16x32xbf16>
      tpu.vector_store %arg9[%83, %c0_38], %82 {strides = array<i32>} : memref<96x32xbf16, #tpu.memory_space<vmem>>, vector<16x32xbf16>,
    } else {
    }
    %c4_i32 = arith.constant 4 : i32
    %c16_i32_31 = arith.constant 16 : i32
    %66 = arith.muli %c4_i32, %c16_i32_31 : i32
    %67 = tpu.assume_multiple %66, 16 : i32
    %68 = arith.cmpi slt, %c4_i32, %33 : i32
    %69 = arith.extui %68 : i1 to i32
    %c0_i32_32 = arith.constant 0 : i32
    %70 = arith.cmpi ne, %69, %c0_i32_32 : i32
    scf.if %70 {
      %c1_i32_37 = arith.constant 1 : i32
      %82 = arith.addi %c1_i32_37, %c4_i32 : i32
      %83 = arith.index_cast %82 : i32 to index
      %84 = memref.load %arg1[%83] : memref<7xi32, #tpu.memory_space<smem>>
      %85 = arith.index_cast %67 : i32 to index
      %c0_38 = arith.constant 0 : index
      %86 = vector.load %arg2[%85, %c0_38] : memref<96x32xbf16, #tpu.memory_space<vmem>>, vector<16x32xbf16>
      %87 = arith.index_cast %84 : i32 to index
      %c0_39 = arith.constant 0 : index
      %c0_40 = arith.constant 0 : index
      %88 = vector.load %arg5[%87, %c0_39, %c0_40] : memref<5x32x64xbf16, #tpu.memory_space<vmem>>, vector<1x32x64xbf16>
      %89 = vector.shape_cast %88 : vector<1x32x64xbf16> to vector<32x64xbf16>
      %cst_41 = arith.constant dense<0.000000e+00> : vector<16x64xf32>
      %90 = tpu.matmul %86, %89, %cst_41 {dimension_numbers = #tpu.dot_dimension_numbers<[1], [0], [0], [1], [0, 0, 1, 1], [], []>} : vector<16x32xbf16>, vector<32x64xbf16>, vector<16x64xf32> -> vector<16x64xf32>
      %91 = arith.index_cast %84 : i32 to index
      %c0_42 = arith.constant 0 : index
      %c0_43 = arith.constant 0 : index
      %92 = vector.load %arg6[%91, %c0_42, %c0_43] : memref<5x1x64xbf16, #tpu.memory_space<vmem>>, vector<1x1x64xbf16>
      %93 = vector.shape_cast %92 : vector<1x1x64xbf16> to vector<1x64xbf16>
      %94 = arith.extf %93 : vector<1x64xbf16> to vector<1x64xf32>
      %95 = vector.broadcast %94 : vector<1x64xf32> to vector<16x64xf32>
      %96 = arith.addf %90, %95 : vector<16x64xf32>
      %97 = arith.mulf %96, %96 : vector<16x64xf32>
      %98 = arith.mulf %96, %97 : vector<16x64xf32>
      %cst_44 = arith.constant 4.471500e-02 : f32
      %99 = vector.broadcast %cst_44 : f32 to vector<16x64xf32>
      %100 = arith.mulf %99, %98 : vector<16x64xf32>
      %101 = arith.addf %96, %100 : vector<16x64xf32>
      %cst_45 = arith.constant 0.797884583 : f32
      %102 = vector.broadcast %cst_45 : f32 to vector<16x64xf32>
      %103 = arith.mulf %102, %101 : vector<16x64xf32>
      %104 = math.tanh %103 : vector<16x64xf32>
      %cst_46 = arith.constant 1.000000e+00 : f32
      %105 = vector.broadcast %cst_46 : f32 to vector<16x64xf32>
      %106 = arith.addf %105, %104 : vector<16x64xf32>
      %cst_47 = arith.constant 5.000000e-01 : f32
      %107 = vector.broadcast %cst_47 : f32 to vector<16x64xf32>
      %108 = arith.mulf %107, %106 : vector<16x64xf32>
      %109 = arith.mulf %96, %108 : vector<16x64xf32>
      %110 = arith.truncf %109 : vector<16x64xf32> to vector<16x64xbf16>
      %111 = arith.index_cast %84 : i32 to index
      %c0_48 = arith.constant 0 : index
      %c0_49 = arith.constant 0 : index
      %112 = vector.load %arg7[%111, %c0_48, %c0_49] : memref<5x64x32xbf16, #tpu.memory_space<vmem>>, vector<1x64x32xbf16>
      %113 = vector.shape_cast %112 : vector<1x64x32xbf16> to vector<64x32xbf16>
      %cst_50 = arith.constant dense<0.000000e+00> : vector<16x32xf32>
      %114 = tpu.matmul %110, %113, %cst_50 {dimension_numbers = #tpu.dot_dimension_numbers<[1], [0], [0], [1], [0, 0, 1, 1], [], []>} : vector<16x64xbf16>, vector<64x32xbf16>, vector<16x32xf32> -> vector<16x32xf32>
      %115 = arith.index_cast %84 : i32 to index
      %c0_51 = arith.constant 0 : index
      %c0_52 = arith.constant 0 : index
      %116 = vector.load %arg8[%115, %c0_51, %c0_52] : memref<5x1x32xbf16, #tpu.memory_space<vmem>>, vector<1x1x32xbf16>
      %117 = vector.shape_cast %116 : vector<1x1x32xbf16> to vector<1x32xbf16>
      %118 = arith.extf %117 : vector<1x32xbf16> to vector<1x32xf32>
      %119 = vector.broadcast %118 : vector<1x32xf32> to vector<16x32xf32>
      %120 = arith.addf %114, %119 : vector<16x32xf32>
      %121 = arith.index_cast %67 : i32 to index
      %c0_53 = arith.constant 0 : index
      %122 = vector.load %arg3[%121, %c0_53] : memref<96x1xf32, #tpu.memory_space<vmem>>, vector<16x1xf32>
      %123 = vector.broadcast %122 : vector<16x1xf32> to vector<16x32xf32>
      %124 = arith.mulf %120, %123 : vector<16x32xf32>
      %125 = arith.truncf %124 : vector<16x32xf32> to vector<16x32xbf16>
      %126 = arith.index_cast %67 : i32 to index
      %c0_54 = arith.constant 0 : index
      %127 = vector.load %arg9[%126, %c0_54] : memref<96x32xbf16, #tpu.memory_space<vmem>>, vector<16x32xbf16>
      tpu.vector_store %arg9[%126, %c0_54], %125 {strides = array<i32>} : memref<96x32xbf16, #tpu.memory_space<vmem>>, vector<16x32xbf16>,
    } else {
    }
    %71 = arith.cmpi sge, %c4_i32, %33 : i32
    %72 = arith.extui %71 : i1 to i32
    %c0_i32_33 = arith.constant 0 : i32
    %73 = arith.cmpi ne, %72, %c0_i32_33 : i32
    scf.if %73 {
      %cst_37 = arith.constant 0.000000e+00 : bf16
      %82 = vector.broadcast %cst_37 : bf16 to vector<16x32xbf16>
      %83 = arith.index_cast %67 : i32 to index
      %c0_38 = arith.constant 0 : index
      %84 = vector.load %arg9[%83, %c0_38] : memref<96x32xbf16, #tpu.memory_space<vmem>>, vector<16x32xbf16>
      tpu.vector_store %arg9[%83, %c0_38], %82 {strides = array<i32>} : memref<96x32xbf16, #tpu.memory_space<vmem>>, vector<16x32xbf16>,
    } else {
    }
    %c5_i32 = arith.constant 5 : i32
    %c16_i32_34 = arith.constant 16 : i32
    %74 = arith.muli %c5_i32, %c16_i32_34 : i32
    %75 = tpu.assume_multiple %74, 16 : i32
    %76 = arith.cmpi slt, %c5_i32, %33 : i32
    %77 = arith.extui %76 : i1 to i32
    %c0_i32_35 = arith.constant 0 : i32
    %78 = arith.cmpi ne, %77, %c0_i32_35 : i32
    scf.if %78 {
      %c1_i32_37 = arith.constant 1 : i32
      %82 = arith.addi %c1_i32_37, %c5_i32 : i32
      %83 = arith.index_cast %82 : i32 to index
      %84 = memref.load %arg1[%83] : memref<7xi32, #tpu.memory_space<smem>>
      %85 = arith.index_cast %75 : i32 to index
      %c0_38 = arith.constant 0 : index
      %86 = vector.load %arg2[%85, %c0_38] : memref<96x32xbf16, #tpu.memory_space<vmem>>, vector<16x32xbf16>
      %87 = arith.index_cast %84 : i32 to index
      %c0_39 = arith.constant 0 : index
      %c0_40 = arith.constant 0 : index
      %88 = vector.load %arg5[%87, %c0_39, %c0_40] : memref<5x32x64xbf16, #tpu.memory_space<vmem>>, vector<1x32x64xbf16>
      %89 = vector.shape_cast %88 : vector<1x32x64xbf16> to vector<32x64xbf16>
      %cst_41 = arith.constant dense<0.000000e+00> : vector<16x64xf32>
      %90 = tpu.matmul %86, %89, %cst_41 {dimension_numbers = #tpu.dot_dimension_numbers<[1], [0], [0], [1], [0, 0, 1, 1], [], []>} : vector<16x32xbf16>, vector<32x64xbf16>, vector<16x64xf32> -> vector<16x64xf32>
      %91 = arith.index_cast %84 : i32 to index
      %c0_42 = arith.constant 0 : index
      %c0_43 = arith.constant 0 : index
      %92 = vector.load %arg6[%91, %c0_42, %c0_43] : memref<5x1x64xbf16, #tpu.memory_space<vmem>>, vector<1x1x64xbf16>
      %93 = vector.shape_cast %92 : vector<1x1x64xbf16> to vector<1x64xbf16>
      %94 = arith.extf %93 : vector<1x64xbf16> to vector<1x64xf32>
      %95 = vector.broadcast %94 : vector<1x64xf32> to vector<16x64xf32>
      %96 = arith.addf %90, %95 : vector<16x64xf32>
      %97 = arith.mulf %96, %96 : vector<16x64xf32>
      %98 = arith.mulf %96, %97 : vector<16x64xf32>
      %cst_44 = arith.constant 4.471500e-02 : f32
      %99 = vector.broadcast %cst_44 : f32 to vector<16x64xf32>
      %100 = arith.mulf %99, %98 : vector<16x64xf32>
      %101 = arith.addf %96, %100 : vector<16x64xf32>
      %cst_45 = arith.constant 0.797884583 : f32
      %102 = vector.broadcast %cst_45 : f32 to vector<16x64xf32>
      %103 = arith.mulf %102, %101 : vector<16x64xf32>
      %104 = math.tanh %103 : vector<16x64xf32>
      %cst_46 = arith.constant 1.000000e+00 : f32
      %105 = vector.broadcast %cst_46 : f32 to vector<16x64xf32>
      %106 = arith.addf %105, %104 : vector<16x64xf32>
      %cst_47 = arith.constant 5.000000e-01 : f32
      %107 = vector.broadcast %cst_47 : f32 to vector<16x64xf32>
      %108 = arith.mulf %107, %106 : vector<16x64xf32>
      %109 = arith.mulf %96, %108 : vector<16x64xf32>
      %110 = arith.truncf %109 : vector<16x64xf32> to vector<16x64xbf16>
      %111 = arith.index_cast %84 : i32 to index
      %c0_48 = arith.constant 0 : index
      %c0_49 = arith.constant 0 : index
      %112 = vector.load %arg7[%111, %c0_48, %c0_49] : memref<5x64x32xbf16, #tpu.memory_space<vmem>>, vector<1x64x32xbf16>
      %113 = vector.shape_cast %112 : vector<1x64x32xbf16> to vector<64x32xbf16>
      %cst_50 = arith.constant dense<0.000000e+00> : vector<16x32xf32>
      %114 = tpu.matmul %110, %113, %cst_50 {dimension_numbers = #tpu.dot_dimension_numbers<[1], [0], [0], [1], [0, 0, 1, 1], [], []>} : vector<16x64xbf16>, vector<64x32xbf16>, vector<16x32xf32> -> vector<16x32xf32>
      %115 = arith.index_cast %84 : i32 to index
      %c0_51 = arith.constant 0 : index
      %c0_52 = arith.constant 0 : index
      %116 = vector.load %arg8[%115, %c0_51, %c0_52] : memref<5x1x32xbf16, #tpu.memory_space<vmem>>, vector<1x1x32xbf16>
      %117 = vector.shape_cast %116 : vector<1x1x32xbf16> to vector<1x32xbf16>
      %118 = arith.extf %117 : vector<1x32xbf16> to vector<1x32xf32>
      %119 = vector.broadcast %118 : vector<1x32xf32> to vector<16x32xf32>
      %120 = arith.addf %114, %119 : vector<16x32xf32>
      %121 = arith.index_cast %75 : i32 to index
      %c0_53 = arith.constant 0 : index
      %122 = vector.load %arg3[%121, %c0_53] : memref<96x1xf32, #tpu.memory_space<vmem>>, vector<16x1xf32>
      %123 = vector.broadcast %122 : vector<16x1xf32> to vector<16x32xf32>
      %124 = arith.mulf %120, %123 : vector<16x32xf32>
      %125 = arith.truncf %124 : vector<16x32xf32> to vector<16x32xbf16>
      %126 = arith.index_cast %75 : i32 to index
      %c0_54 = arith.constant 0 : index
      %127 = vector.load %arg9[%126, %c0_54] : memref<96x32xbf16, #tpu.memory_space<vmem>>, vector<16x32xbf16>
      tpu.vector_store %arg9[%126, %c0_54], %125 {strides = array<i32>} : memref<96x32xbf16, #tpu.memory_space<vmem>>, vector<16x32xbf16>,
    } else {
    }
    %79 = arith.cmpi sge, %c5_i32, %33 : i32
    %80 = arith.extui %79 : i1 to i32
    %c0_i32_36 = arith.constant 0 : i32
    %81 = arith.cmpi ne, %80, %c0_i32_36 : i32
    scf.if %81 {
      %cst_37 = arith.constant 0.000000e+00 : bf16
      %82 = vector.broadcast %cst_37 : bf16 to vector<16x32xbf16>
      %83 = arith.index_cast %75 : i32 to index
      %c0_38 = arith.constant 0 : index
      %84 = vector.load %arg9[%83, %c0_38] : memref<96x32xbf16, #tpu.memory_space<vmem>>, vector<16x32xbf16>
      tpu.vector_store %arg9[%83, %c0_38], %82 {strides = array<i32>} : memref<96x32xbf16, #tpu.memory_space<vmem>>, vector<16x32xbf16>,
    } else {
    }
    %c6_i32 = arith.constant 6 : i32
    return
  }
  func.func @transform_0(%arg0: i32, %arg1: memref<7xi32, #tpu.memory_space<smem>>) -> (i32, i32) {
    %c0_i32 = arith.constant 0 : i32
    %c0_i32_0 = arith.constant 0 : i32
    %c0_i32_1 = arith.constant 0 : i32
    return %c0_i32, %c0_i32_0 : i32, i32
  }
  func.func @transform_1(%arg0: i32, %arg1: memref<7xi32, #tpu.memory_space<smem>>) -> (i32, i32) {
    %c0_i32 = arith.constant 0 : i32
    %c0_i32_0 = arith.constant 0 : i32
    %c0_i32_1 = arith.constant 0 : i32
    return %c0_i32, %c0_i32_0 : i32, i32
  }
  func.func @transform_2(%arg0: i32, %arg1: memref<7xi32, #tpu.memory_space<smem>>) -> (i32, i32) {
    %c0_i32 = arith.constant 0 : i32
    %c0_i32_0 = arith.constant 0 : i32
    %c0_i32_1 = arith.constant 0 : i32
    return %c0_i32, %c0_i32_0 : i32, i32
  }
  func.func @transform_3(%arg0: i32, %arg1: memref<7xi32, #tpu.memory_space<smem>>) -> (i32, i32, i32) {
    %c0_i32 = arith.constant 0 : i32
    %c0_i32_0 = arith.constant 0 : i32
    %c0_i32_1 = arith.constant 0 : i32
    %c0_i32_2 = arith.constant 0 : i32
    return %c0_i32, %c0_i32_0, %c0_i32_1 : i32, i32, i32
  }
  func.func @transform_4(%arg0: i32, %arg1: memref<7xi32, #tpu.memory_space<smem>>) -> (i32, i32, i32) {
    %c0_i32 = arith.constant 0 : i32
    %c0_i32_0 = arith.constant 0 : i32
    %c0_i32_1 = arith.constant 0 : i32
    %c0_i32_2 = arith.constant 0 : i32
    return %c0_i32, %c0_i32_0, %c0_i32_1 : i32, i32, i32
  }
  func.func @transform_5(%arg0: i32, %arg1: memref<7xi32, #tpu.memory_space<smem>>) -> (i32, i32, i32) {
    %c0_i32 = arith.constant 0 : i32
    %c0_i32_0 = arith.constant 0 : i32
    %c0_i32_1 = arith.constant 0 : i32
    %c0_i32_2 = arith.constant 0 : i32
    return %c0_i32, %c0_i32_0, %c0_i32_1 : i32, i32, i32
  }
  func.func @transform_6(%arg0: i32, %arg1: memref<7xi32, #tpu.memory_space<smem>>) -> (i32, i32, i32) {
    %c0_i32 = arith.constant 0 : i32
    %c0_i32_0 = arith.constant 0 : i32
    %c0_i32_1 = arith.constant 0 : i32
    %c0_i32_2 = arith.constant 0 : i32
    return %c0_i32, %c0_i32_0, %c0_i32_1 : i32, i32, i32
  }
  func.func @transform_7(%arg0: i32, %arg1: memref<7xi32, #tpu.memory_space<smem>>) -> (i32, i32) {
    %c0_i32 = arith.constant 0 : i32
    %c0_i32_0 = arith.constant 0 : i32
    %c0_i32_1 = arith.constant 0 : i32
    return %c0_i32, %c0_i32_0 : i32, i32
  }
  func.func @transform_8(%arg0: i32, %arg1: memref<7xi32, #tpu.memory_space<smem>>) -> (i32, i32) {
    %c0_i32 = arith.constant 0 : i32
    %c0_i32_0 = arith.constant 0 : i32
    %c0_i32_1 = arith.constant 0 : i32
    return %c0_i32, %c0_i32_0 : i32, i32
  }
}

</mosaic_0001>

<llo_original>
// kernel: custom-call.1
$region0: #{custom-call.1}
  %s0 = inlined_call_operand.vmem [shape: u32[6], index: 0, kind: output, shape index: {}]

// kernel: eq.8
$region0: #{eq.8}
  %s0 = inlined_call_operand.vmem [shape: s32[16,2], index: 0, kind: input, shape index: {}]
  %s1 = inlined_call_operand.vmem [shape: s32[32], index: 1, kind: output, shape index: {}]
  $region1: #{eq.8} parent=0
    #allocation0 [shape = 'u8[4096]{0}', space=vmem, size = 0x1000, scoped, tag = 'scoped mem for output reshape']
    %v2 = vld [vmem:[%s0] sm:$0x1]
    %vm3 = vcmask 15360
    %4 = vst.msk [vmem:[#allocation0] sm:$0x1] %vm3, %v2
    %s5 = scalar_lea.vmem %s0, 15
    %v6 = vld [vmem:[%s5] sm:$0x1]
    %7 = vrot.lane.b32.xlu0 %v6, 30
    %v8 = vpop.permute.xlu0 %7
    %vm9 = vcmask 261360
    %10 = vst.msk [vmem:[#allocation0] sm:$0x1] %vm9, %v8
    %s11 = scalar_lea.vmem %s0, 14
    %v12 = vld [vmem:[%s11] sm:$0x1]
    %13 = vrot.lane.b32.xlu0 %v12, 28
    %v14 = vpop.permute.xlu0 %13
    %vm15 = vcmask 244960
    %16 = vst.msk [vmem:[#allocation0] sm:$0x1] %vm15, %v14
    %s17 = scalar_lea.vmem %s0, 13
    %v18 = vld [vmem:[%s17] sm:$0x1]
    %19 = vrot.lane.b32.xlu0 %v18, 26
    %v20 = vpop.permute.xlu0 %19
    %vm21 = vcmask 228560
    %22 = vst.msk [vmem:[#allocation0] sm:$0x1] %vm21, %v20
    %s23 = scalar_lea.vmem %s0, 12
    %v24 = vld [vmem:[%s23] sm:$0x1]
    %25 = vrot.lane.b32.xlu0 %v24, 24
    %v26 = vpop.permute.xlu0 %25
    %vm27 = vcmask 212160
    %28 = vst.msk [vmem:[#allocation0] sm:$0x1] %vm27, %v26
    %s29 = scalar_lea.vmem %s0, 11
    %v30 = vld [vmem:[%s29] sm:$0x1]
    %31 = vrot.lane.b32.xlu0 %v30, 22
    %v32 = vpop.permute.xlu0 %31
    %vm33 = vcmask 195760
    %34 = vst.msk [vmem:[#allocation0] sm:$0x1] %vm33, %v32
    %s35 = scalar_lea.vmem %s0, 10
    %v36 = vld [vmem:[%s35] sm:$0x1]
    %37 = vrot.lane.b32.xlu0 %v36, 20
    %v38 = vpop.permute.xlu0 %37
    %vm39 = vcmask 179360
    %40 = vst.msk [vmem:[#allocation0] sm:$0x1] %vm39, %v38
    %s41 = scalar_lea.vmem %s0, 9
    %v42 = vld [vmem:[%s41] sm:$0x1]
    %43 = vrot.lane.b32.xlu0 %v42, 18
    %v44 = vpop.permute.xlu0 %43
    %vm45 = vcmask 162960
    %46 = vst.msk [vmem:[#allocation0] sm:$0x1] %vm45, %v44
    %s47 = scalar_lea.vmem %s0, 8
    %v48 = vld [vmem:[%s47] sm:$0x1]
    %49 = vrot.lane.b32.xlu0 %v48, 16
    %v50 = vpop.permute.xlu0 %49
    %vm51 = vcmask 146560
    %52 = vst.msk [vmem:[#allocation0] sm:$0x1] %vm51, %v50
    %s53 = scalar_lea.vmem %s0, 7
    %v54 = vld [vmem:[%s53] sm:$0x1]
    %55 = vrot.lane.b32.xlu0 %v54, 14
    %v56 = vpop.permute.xlu0 %55
    %vm57 = vcmask 130160
    %58 = vst.msk [vmem:[#allocation0] sm:$0x1] %vm57, %v56
    %s59 = scalar_lea.vmem %s0, 6
    %v60 = vld [vmem:[%s59] sm:$0x1]
    %61 = vrot.lane.b32.xlu0 %v60, 12
    %v62 = vpop.permute.xlu0 %61
    %vm63 = vcmask 113760
    %64 = vst.msk [vmem:[#allocation0] sm:$0x1] %vm63, %v62
    %s65 = scalar_lea.vmem %s0, 5
    %v66 = vld [vmem:[%s65] sm:$0x1]
    %67 = vrot.lane.b32.xlu0 %v66, 10
    %v68 = vpop.permute.xlu0 %67
    %vm69 = vcmask 97360
    %70 = vst.msk [vmem:[#allocation0] sm:$0x1] %vm69, %v68
    %s71 = scalar_lea.vmem %s0, 4
    %v72 = vld [vmem:[%s71] sm:$0x1]
    %73 = vrot.lane.b32.xlu0 %v72, 8
    %v74 = vpop.permute.xlu0 %73
    %vm75 = vcmask 80960
    %76 = vst.msk [vmem:[#allocation0] sm:$0x1] %vm75, %v74
    %s77 = scalar_lea.vmem %s0, 3
    %v78 = vld [vmem:[%s77] sm:$0x1]
    %79 = vrot.lane.b32.xlu0 %v78, 6
    %v80 = vpop.permute.xlu0 %79
    %vm81 = vcmask 64560
    %82 = vst.msk [vmem:[#allocation0] sm:$0x1] %vm81, %v80
    %s83 = scalar_lea.vmem %s0, 2
    %v84 = vld [vmem:[%s83] sm:$0x1]
    %85 = vrot.lane.b32.xlu0 %v84, 4
    %v86 = vpop.permute.xlu0 %85
    %vm87 = vcmask 48160
    %88 = vst.msk [vmem:[#allocation0] sm:$0x1] %vm87, %v86
    %s89 = scalar_lea.vmem %s0, 1
    %v90 = vld [vmem:[%s89] sm:$0x1]
    %91 = vrot.lane.b32.xlu0 %v90, 2
    %v92 = vpop.permute.xlu0 %91
    %vm93 = vcmask 31760
    %94 = vst.msk [vmem:[#allocation0] sm:$0x1] %vm93, %v92
    %s96 = ssub.s32 2, 1
    %v97 = vld [vmem:[#allocation0] sm:%s96]
    %s99 = ssub.s32 2, 1
    %100 = vst [vmem:[%s1] sm:%s99] %v97

// kernel: moe_forward.1
$region0: #{moe_forward.1}
  #allocation0 [shape = 'u32[]', space=smem, size = 0x4, offset = 0x4, fixed_abs, tag = 'smem constant byte address 0x4 - core index']
  #allocation1 [shape = 'u32[72,128]{1,0:T(1,128)}', space=vmem, size = 0x9000, scoped, tag = 'internal scratch']
  #allocation2 [shape = 's32[1]{0}', space=sflag, size = 0x4, scoped, tag = 'scoped memory for moe_forward.1']
  #allocation3 [shape = 'u8[512]{0}', space=smem, size = 0x200, scoped, tag = 'prefetched SMEM operand 0']
  %s0 = inlined_call_operand.vmem [shape: s32[7], index: 0, kind: input, shape index: {}]
  %s1 = inlined_call_operand.vmem [shape: bf16[96,32], index: 1, kind: input, shape index: {}]
  %s2 = inlined_call_operand.vmem [shape: f32[96,1], index: 2, kind: input, shape index: {}]
  %s3 = inlined_call_operand.vmem [shape: bf16[16,32], index: 3, kind: input, shape index: {}]
  %s4 = inlined_call_operand.vmem [shape: bf16[5,32,64], index: 4, kind: input, shape index: {}]
  %s5 = inlined_call_operand.vmem [shape: bf16[5,1,64], index: 5, kind: input, shape index: {}]
  %s6 = inlined_call_operand.vmem [shape: bf16[5,64,32], index: 6, kind: input, shape index: {}]
  %s7 = inlined_call_operand.vmem [shape: bf16[5,1,32], index: 7, kind: input, shape index: {}]
  %s8 = inlined_call_operand.vmem [shape: bf16[96,32], index: 8, kind: output, shape index: {0}]
  %s9 = inlined_call_operand.vmem [shape: bf16[16,32], index: 9, kind: output, shape index: {1}]
  %10 = xla_tuple %s8, %s9
  %s11 = sld [smem:[#allocation0]]
  $region94: #{moe_forward.1} parent=0
    _
  %s13 = ssub.s32 1, %s11
  %s14 = scalar_select 0, %s13, %s11
  %s16 = sshll.u32 %s0, 4
  %s17 = int_to_ptr.vmem [resolvable:$true] %s16
  %19 = dma.vmem_to_smem %s17, 16, [#allocation3], [#allocation2]
  %21 = dma.done [#allocation2], 16
  %22 = sfence
  // Predicated region
  $region2: #{moe_forward.1} parent=0 // pred_check
    _
  $region3: #{moe_forward.1} parent=0 // pred_check_branch
    %24 = sbr.rel (0) target = $region5
  $region4: #{moe_forward.1} parent=0 // pred_region
    _
  $region5: #{moe_forward.1} parent=0 // pred_fallthru
    _
  // Predicated region
  $region6: #{moe_forward.1} parent=0 // pred_check
    _
  $region7: #{moe_forward.1} parent=0 // pred_check_branch
    %26 = sbr.rel (0) target = $region9
  $region8: #{moe_forward.1} parent=0 // pred_region
    _
  $region9: #{moe_forward.1} parent=0 // pred_fallthru
    _
  // Predicated region
  $region10: #{moe_forward.1} parent=0 // pred_check
    _
  $region11: #{moe_forward.1} parent=0 // pred_check_branch
    %28 = sbr.rel (0) target = $region13
  $region12: #{moe_forward.1} parent=0 // pred_region
    _
  $region13: #{moe_forward.1} parent=0 // pred_fallthru
    _
  // Predicated region
  $region14: #{moe_forward.1} parent=0 // pred_check
    _
  $region15: #{moe_forward.1} parent=0 // pred_check_branch
    %30 = sbr.rel (0) target = $region17
  $region16: #{moe_forward.1} parent=0 // pred_region
    _
  $region17: #{moe_forward.1} parent=0 // pred_fallthru
    _
  // Predicated region
  $region18: #{moe_forward.1} parent=0 // pred_check
    _
  $region19: #{moe_forward.1} parent=0 // pred_check_branch
    %32 = sbr.rel (0) target = $region21
  $region20: #{moe_forward.1} parent=0 // pred_region
    _
  $region21: #{moe_forward.1} parent=0 // pred_fallthru
    _
  // Predicated region
  $region22: #{moe_forward.1} parent=0 // pred_check
    _
  $region23: #{moe_forward.1} parent=0 // pred_check_branch
    %34 = sbr.rel (0) target = $region25
  $region24: #{moe_forward.1} parent=0 // pred_region
    _
  $region25: #{moe_forward.1} parent=0 // pred_fallthru
    _
  // Predicated region
  $region26: #{moe_forward.1} parent=0 // pred_check
    _
  $region27: #{moe_forward.1} parent=0 // pred_check_branch
    %36 = sbr.rel (0) target = $region29
  $region28: #{moe_forward.1} parent=0 // pred_region
    _
  $region29: #{moe_forward.1} parent=0 // pred_fallthru
    _
  %v38 = vld [vmem:[%s3] sm:$0xf]
  %v39 = vld [vmem:[%s3 + $0x4] sm:$0xf]
  %s40 = scalar_lea.vmem %s4, 64
  %v41 = vld [vmem:[%s40] sm:$0xf]
  %v42 = vld [vmem:[%s40 + $0x4] sm:$0xf]
  %v43 = vld [vmem:[%s40 + $0x8] sm:$0xf]
  %v44 = vld [vmem:[%s40 + $0xc] sm:$0xf]
  %s45 = scalar_lea.vmem %s5, 4
  %v46 = vld [vmem:[%s45] sm:$0x1]
  %v47 = vunpack.c.l.bf16 %v46
  %v48 = vperm.slane %v47, 0
  %v51 = vunpack.c.l.b16 %v38
  %v52 = vunpack.c.l.b16 %v39
  %v53 = vpack.c.b16 %v52, %v51
  %v58 = vunpack.c.l.b16 %v41
  %v59 = vunpack.c.l.b16 %v42
  %v60 = vunpack.c.l.b16 %v43
  %v61 = vunpack.c.l.b16 %v44
  %v62 = vpack.c.b16 %v59, %v58
  %v63 = vpack.c.b16 %v61, %v60
  %vm66 = vcmask 261120
  %v68 = vsel %vm66, %v53, 0
  %70 = vmatpush.bf16.msra.mxu0 0
  %71 = vmatpush.bf16.msra.mxu0 0
  %72 = vmatpush.bf16.msra.mxu0 0
  %73 = vmatpush.bf16.msra.mxu0 0
  %74 = vmatpush.bf16.msra.mxu0 0
  %75 = vmatpush.bf16.msra.mxu0 0
  %76 = vmatpush.bf16.msra.mxu0 %v63
  %77 = vmatpush.bf16.msra.mxu0 %v62
  %78 = vmatmul.bf16.gmra.mxu0 %v68
  %v79 = vpop.f32.mrf.mxu0
  %v80 = vadd.f32 %v48, %v79
  %v81 = vpop.f32.mrf.mxu0
  %v82 = vadd.f32 %v48, %v81
  %83 = vdwg.mxu0
  %v84 = vmul.f32 %v80, %v80
  %v85 = vmul.f32 %v82, %v82
  %v86 = vmul.f32 %v80, %v84
  %v87 = vmul.f32 %v82, %v85
  %v88 = vmul.f32 %v86, 0.044715
  %v89 = vmul.f32 %v87, 0.044715
  %v90 = vadd.f32 %v80, %v88
  %v91 = vadd.f32 %v82, %v89
  %v92 = vmul.f32 %v90, 0.7978846
  %v93 = vmul.f32 %v91, 0.7978846
  %v94 = vtanh.pop %v92
  %v95 = vtanh.pop %v93
  %v96 = vadd.f32 %v94, 1.0
  %v97 = vadd.f32 %v95, 1.0
  %v98 = vmul.f32 %v96, 0.5
  %v99 = vmul.f32 %v97, 0.5
  %v100 = vmul.f32 %v80, %v98
  %v101 = vmul.f32 %v82, %v99
  %v102 = vpack.c.bf16 %v101, %v100
  %s103 = scalar_lea.vmem %s6, 128
  %v104 = vld [vmem:[%s103] sm:$0xf]
  %v105 = vld [vmem:[%s103 + $0x4] sm:$0xf]
  %v106 = vld [vmem:[%s103 + $0x8] sm:$0xf]
  %v107 = vld [vmem:[%s103 + $0xc] sm:$0xf]
  %v108 = vld [vmem:[%s103 + $0x10] sm:$0xf]
  %v109 = vld [vmem:[%s103 + $0x14] sm:$0xf]
  %v110 = vld [vmem:[%s103 + $0x18] sm:$0xf]
  %v111 = vld [vmem:[%s103 + $0x1c] sm:$0xf]
  %s112 = scalar_lea.vmem %s7, 4
  %v113 = vld [vmem:[%s112] sm:$0x1]
  %v114 = vunpack.c.l.bf16 %v113
  %v115 = vperm.slane %v114, 0
  %v124 = vunpack.c.l.b16 %v104
  %v125 = vunpack.c.l.b16 %v105
  %v126 = vunpack.c.l.b16 %v106
  %v127 = vunpack.c.l.b16 %v107
  %v128 = vunpack.c.l.b16 %v108
  %v129 = vunpack.c.l.b16 %v109
  %v130 = vunpack.c.l.b16 %v110
  %v131 = vunpack.c.l.b16 %v111
  %v132 = vpack.c.b16 %v125, %v124
  %v133 = vpack.c.b16 %v127, %v126
  %v134 = vpack.c.b16 %v129, %v128
  %v135 = vpack.c.b16 %v131, %v130
  %vm140 = vcmask 523264
  %v142 = vsel %vm140, %v102, 0
  %144 = vmatpush.bf16.msra.mxu0 0
  %145 = vmatpush.bf16.msra.mxu0 0
  %146 = vmatpush.bf16.msra.mxu0 0
  %147 = vmatpush.bf16.msra.mxu0 0
  %148 = vmatpush.bf16.msra.mxu0 %v135
  %149 = vmatpush.bf16.msra.mxu0 %v134
  %150 = vmatpush.bf16.msra.mxu0 %v133
  %151 = vmatpush.bf16.msra.mxu0 %v132
  %152 = vmatmul.bf16.gmra.mxu0 %v142
  %v153 = vpop.f32.mrf.mxu0
  %v154 = vadd.f32 %v115, %v153
  %v155 = vpop.f32.mrf.mxu0
  %v156 = vadd.f32 %v115, %v155
  %157 = vdwg.mxu0
  %v158 = vpack.c.bf16 %v154, %v154
  %v159 = vpack.c.bf16 %v156, %v156
  %vm160 = vcmask 257024
  %161 = vst.msk [vmem:[%s9] sm:$0xf] %vm160, %v158
  %162 = vst.msk [vmem:[%s9 + $0x4] sm:$0xf] %vm160, %v159
  %s163 = sld [smem:[#allocation3]]
  %p164 = scmp.gt.s32.totalorder %s163, 0
  // Predicated region
  $region30: #{moe_forward.1} parent=0 // pred_check
    %p165 = pneg %p164
  $region31: #{moe_forward.1} parent=0 // pred_check_branch
    %167 = sbr.rel (%p165) target = $region33
  $region32: #{moe_forward.1} parent=0 // pred_region
    %s168 = sld [smem:[#allocation3 + $0x1]]
    %v169 = vld [vmem:[%s1] sm:$0xf]
    %v170 = vld [vmem:[%s1 + $0x4] sm:$0xf]
    %s171 = smul.u32 %s168, 4
    %s172 = smul.addr %s171, 4
    %s173 = scalar_lea.vmem %s4, %s172
    %v174 = vld [vmem:[%s173] sm:$0xf]
    %v175 = vld [vmem:[%s173 + $0x4] sm:$0xf]
    %v176 = vld [vmem:[%s173 + $0x8] sm:$0xf]
    %v177 = vld [vmem:[%s173 + $0xc] sm:$0xf]
    %s178 = scalar_lea.vmem %s5, %s168
    %v179 = vld [vmem:[%s178] sm:$0x1]
    %v180 = vunpack.c.l.bf16 %v179
    %v181 = vperm.slane %v180, 0
    %v184 = vunpack.c.l.b16 %v169
    %v185 = vunpack.c.l.b16 %v170
    %v186 = vpack.c.b16 %v185, %v184
    %v191 = vunpack.c.l.b16 %v174
    %v192 = vunpack.c.l.b16 %v175
    %v193 = vunpack.c.l.b16 %v176
    %v194 = vunpack.c.l.b16 %v177
    %v195 = vpack.c.b16 %v192, %v191
    %v196 = vpack.c.b16 %v194, %v193
    %v200 = vsel %vm66, %v186, 0
    %202 = vmatpush.bf16.msra.mxu0 0
    %203 = vmatpush.bf16.msra.mxu0 0
    %204 = vmatpush.bf16.msra.mxu0 0
    %205 = vmatpush.bf16.msra.mxu0 0
    %206 = vmatpush.bf16.msra.mxu0 0
    %207 = vmatpush.bf16.msra.mxu0 0
    %208 = vmatpush.bf16.msra.mxu0 %v196
    %209 = vmatpush.bf16.msra.mxu0 %v195
    %210 = vmatmul.bf16.gmra.mxu0 %v200
    %v211 = vpop.f32.mrf.mxu0
    %v212 = vadd.f32 %v181, %v211
    %v213 = vpop.f32.mrf.mxu0
    %v214 = vadd.f32 %v181, %v213
    %215 = vdwg.mxu0
    %v216 = vmul.f32 %v212, %v212
    %v217 = vmul.f32 %v214, %v214
    %v218 = vmul.f32 %v212, %v216
    %v219 = vmul.f32 %v214, %v217
    %v220 = vmul.f32 %v218, 0.044715
    %v221 = vmul.f32 %v219, 0.044715
    %v222 = vadd.f32 %v212, %v220
    %v223 = vadd.f32 %v214, %v221
    %v224 = vmul.f32 %v222, 0.7978846
    %v225 = vmul.f32 %v223, 0.7978846
    %v226 = vtanh.pop %v224
    %v227 = vtanh.pop %v225
    %v228 = vadd.f32 %v226, 1.0
    %v229 = vadd.f32 %v227, 1.0
    %v230 = vmul.f32 %v228, 0.5
    %v231 = vmul.f32 %v229, 0.5
    %v232 = vmul.f32 %v212, %v230
    %v233 = vmul.f32 %v214, %v231
    %v234 = vpack.c.bf16 %v233, %v232
    %s235 = smul.u32 %s168, 8
    %s236 = smul.addr %s235, 4
    %s237 = scalar_lea.vmem %s6, %s236
    %v238 = vld [vmem:[%s237] sm:$0xf]
    %v239 = vld [vmem:[%s237 + $0x4] sm:$0xf]
    %v240 = vld [vmem:[%s237 + $0x8] sm:$0xf]
    %v241 = vld [vmem:[%s237 + $0xc] sm:$0xf]
    %v242 = vld [vmem:[%s237 + $0x10] sm:$0xf]
    %v243 = vld [vmem:[%s237 + $0x14] sm:$0xf]
    %v244 = vld [vmem:[%s237 + $0x18] sm:$0xf]
    %v245 = vld [vmem:[%s237 + $0x1c] sm:$0xf]
    %s246 = scalar_lea.vmem %s7, %s168
    %v247 = vld [vmem:[%s246] sm:$0x1]
    %v248 = vunpack.c.l.bf16 %v247
    %v249 = vperm.slane %v248, 0
    %v258 = vunpack.c.l.b16 %v238
    %v259 = vunpack.c.l.b16 %v239
    %v260 = vunpack.c.l.b16 %v240
    %v261 = vunpack.c.l.b16 %v241
    %v262 = vunpack.c.l.b16 %v242
    %v263 = vunpack.c.l.b16 %v243
    %v264 = vunpack.c.l.b16 %v244
    %v265 = vunpack.c.l.b16 %v245
    %v266 = vpack.c.b16 %v259, %v258
    %v267 = vpack.c.b16 %v261, %v260
    %v268 = vpack.c.b16 %v263, %v262
    %v269 = vpack.c.b16 %v265, %v264
    %v275 = vsel %vm140, %v234, 0
    %277 = vmatpush.bf16.msra.mxu0 0
    %278 = vmatpush.bf16.msra.mxu0 0
    %279 = vmatpush.bf16.msra.mxu0 0
    %280 = vmatpush.bf16.msra.mxu0 0
    %281 = vmatpush.bf16.msra.mxu0 %v269
    %282 = vmatpush.bf16.msra.mxu0 %v268
    %283 = vmatpush.bf16.msra.mxu0 %v267
    %284 = vmatpush.bf16.msra.mxu0 %v266
    %285 = vmatmul.bf16.gmra.mxu0 %v275
    %v286 = vpop.f32.mrf.mxu0
    %v287 = vadd.f32 %v249, %v286
    %v288 = vpop.f32.mrf.mxu0
    %v289 = vadd.f32 %v249, %v288
    %290 = vdwg.mxu0
    %v291 = vld [vmem:[%s2] sm:$0xff]
    %v292 = vld [vmem:[%s2 + $0x8] sm:$0xff]
    %294 = vset.pattern.permute.xlu0 0
    %295 = vperm.xlu0 %294, %v291
    %v296 = vpop.permute.xlu0 %295
    %299 = vset.pattern.permute.xlu0 0
    %300 = vperm.xlu0 %299, %v292
    %v301 = vpop.permute.xlu0 %300
    %v303 = vmul.f32 %v287, %v296
    %v304 = vmul.f32 %v289, %v301
    %v305 = vpack.c.bf16 %v303, %v303
    %v306 = vpack.c.bf16 %v304, %v304
    %307 = vst.msk [vmem:[%s8] sm:$0xf] %vm160, %v305
    %308 = vst.msk [vmem:[%s8 + $0x4] sm:$0xf] %vm160, %v306
  $region33: #{moe_forward.1} parent=0 // pred_fallthru
    _
  %p309 = scmp.le.s32.totalorder %s163, 0
  // Predicated region
  $region34: #{moe_forward.1} parent=0 // pred_check
    %p310 = pneg %p309
  $region35: #{moe_forward.1} parent=0 // pred_check_branch
    %312 = sbr.rel (%p310) target = $region37
  $region36: #{moe_forward.1} parent=0 // pred_region
    %313 = vst.msk [vmem:[%s8] sm:$0xf] %vm160, 0
    %314 = vst.msk [vmem:[%s8 + $0x4] sm:$0xf] %vm160, 0
  $region37: #{moe_forward.1} parent=0 // pred_fallthru
    _
  %p315 = scmp.gt.s32.totalorder %s163, 1
  // Predicated region
  $region38: #{moe_forward.1} parent=0 // pred_check
    %p316 = pneg %p315
  $region39: #{moe_forward.1} parent=0 // pred_check_branch
    %318 = sbr.rel (%p316) target = $region41
  $region40: #{moe_forward.1} parent=0 // pred_region
    %s319 = sld [smem:[#allocation3 + $0x2]]
    %s320 = scalar_lea.vmem %s1, 8
    %v321 = vld [vmem:[%s320] sm:$0xf]
    %v322 = vld [vmem:[%s320 + $0x4] sm:$0xf]
    %s323 = smul.u32 %s319, 4
    %s324 = smul.addr %s323, 4
    %s325 = scalar_lea.vmem %s4, %s324
    %v326 = vld [vmem:[%s325] sm:$0xf]
    %v327 = vld [vmem:[%s325 + $0x4] sm:$0xf]
    %v328 = vld [vmem:[%s325 + $0x8] sm:$0xf]
    %v329 = vld [vmem:[%s325 + $0xc] sm:$0xf]
    %s330 = scalar_lea.vmem %s5, %s319
    %v331 = vld [vmem:[%s330] sm:$0x1]
    %v332 = vunpack.c.l.bf16 %v331
    %v333 = vperm.slane %v332, 0
    %v336 = vunpack.c.l.b16 %v321
    %v337 = vunpack.c.l.b16 %v322
    %v338 = vpack.c.b16 %v337, %v336
    %v343 = vunpack.c.l.b16 %v326
    %v344 = vunpack.c.l.b16 %v327
    %v345 = vunpack.c.l.b16 %v328
    %v346 = vunpack.c.l.b16 %v329
    %v347 = vpack.c.b16 %v344, %v343
    %v348 = vpack.c.b16 %v346, %v345
    %v352 = vsel %vm66, %v338, 0
    %354 = vmatpush.bf16.msra.mxu0 0
    %355 = vmatpush.bf16.msra.mxu0 0
    %356 = vmatpush.bf16.msra.mxu0 0
    %357 = vmatpush.bf16.msra.mxu0 0
    %358 = vmatpush.bf16.msra.mxu0 0
    %359 = vmatpush.bf16.msra.mxu0 0
    %360 = vmatpush.bf16.msra.mxu0 %v348
    %361 = vmatpush.bf16.msra.mxu0 %v347
    %362 = vmatmul.bf16.gmra.mxu0 %v352
    %v363 = vpop.f32.mrf.mxu0
    %v364 = vadd.f32 %v333, %v363
    %v365 = vpop.f32.mrf.mxu0
    %v366 = vadd.f32 %v333, %v365
    %367 = vdwg.mxu0
    %v368 = vmul.f32 %v364, %v364
    %v369 = vmul.f32 %v366, %v366
    %v370 = vmul.f32 %v364, %v368
    %v371 = vmul.f32 %v366, %v369
    %v372 = vmul.f32 %v370, 0.044715
    %v373 = vmul.f32 %v371, 0.044715
    %v374 = vadd.f32 %v364, %v372
    %v375 = vadd.f32 %v366, %v373
    %v376 = vmul.f32 %v374, 0.7978846
    %v377 = vmul.f32 %v375, 0.7978846
    %v378 = vtanh.pop %v376
    %v379 = vtanh.pop %v377
    %v380 = vadd.f32 %v378, 1.0
    %v381 = vadd.f32 %v379, 1.0
    %v382 = vmul.f32 %v380, 0.5
    %v383 = vmul.f32 %v381, 0.5
    %v384 = vmul.f32 %v364, %v382
    %v385 = vmul.f32 %v366, %v383
    %v386 = vpack.c.bf16 %v385, %v384
    %s387 = smul.u32 %s319, 8
    %s388 = smul.addr %s387, 4
    %s389 = scalar_lea.vmem %s6, %s388
    %v390 = vld [vmem:[%s389] sm:$0xf]
    %v391 = vld [vmem:[%s389 + $0x4] sm:$0xf]
    %v392 = vld [vmem:[%s389 + $0x8] sm:$0xf]
    %v393 = vld [vmem:[%s389 + $0xc] sm:$0xf]
    %v394 = vld [vmem:[%s389 + $0x10] sm:$0xf]
    %v395 = vld [vmem:[%s389 + $0x14] sm:$0xf]
    %v396 = vld [vmem:[%s389 + $0x18] sm:$0xf]
    %v397 = vld [vmem:[%s389 + $0x1c] sm:$0xf]
    %s398 = scalar_lea.vmem %s7, %s319
    %v399 = vld [vmem:[%s398] sm:$0x1]
    %v400 = vunpack.c.l.bf16 %v399
    %v401 = vperm.slane %v400, 0
    %v410 = vunpack.c.l.b16 %v390
    %v411 = vunpack.c.l.b16 %v391
    %v412 = vunpack.c.l.b16 %v392
    %v413 = vunpack.c.l.b16 %v393
    %v414 = vunpack.c.l.b16 %v394
    %v415 = vunpack.c.l.b16 %v395
    %v416 = vunpack.c.l.b16 %v396
    %v417 = vunpack.c.l.b16 %v397
    %v418 = vpack.c.b16 %v411, %v410
    %v419 = vpack.c.b16 %v413, %v412
    %v420 = vpack.c.b16 %v415, %v414
    %v421 = vpack.c.b16 %v417, %v416
    %v427 = vsel %vm140, %v386, 0
    %429 = vmatpush.bf16.msra.mxu0 0
    %430 = vmatpush.bf16.msra.mxu0 0
    %431 = vmatpush.bf16.msra.mxu0 0
    %432 = vmatpush.bf16.msra.mxu0 0
    %433 = vmatpush.bf16.msra.mxu0 %v421
    %434 = vmatpush.bf16.msra.mxu0 %v420
    %435 = vmatpush.bf16.msra.mxu0 %v419
    %436 = vmatpush.bf16.msra.mxu0 %v418
    %437 = vmatmul.bf16.gmra.mxu0 %v427
    %v438 = vpop.f32.mrf.mxu0
    %v439 = vadd.f32 %v401, %v438
    %v440 = vpop.f32.mrf.mxu0
    %v441 = vadd.f32 %v401, %v440
    %442 = vdwg.mxu0
    %s443 = scalar_lea.vmem %s2, 16
    %v444 = vld [vmem:[%s443] sm:$0xff]
    %v445 = vld [vmem:[%s443 + $0x8] sm:$0xff]
    %447 = vset.pattern.permute.xlu0 0
    %448 = vperm.xlu0 %447, %v444
    %v449 = vpop.permute.xlu0 %448
    %452 = vset.pattern.permute.xlu0 0
    %453 = vperm.xlu0 %452, %v445
    %v454 = vpop.permute.xlu0 %453
    %v456 = vmul.f32 %v439, %v449
    %v457 = vmul.f32 %v441, %v454
    %v458 = vpack.c.bf16 %v456, %v456
    %v459 = vpack.c.bf16 %v457, %v457
    %s460 = scalar_lea.vmem %s8, 8
    %461 = vst.msk [vmem:[%s460] sm:$0xf] %vm160, %v458
    %462 = vst.msk [vmem:[%s460 + $0x4] sm:$0xf] %vm160, %v459
  $region41: #{moe_forward.1} parent=0 // pred_fallthru
    _
  %p463 = scmp.le.s32.totalorder %s163, 1
  // Predicated region
  $region42: #{moe_forward.1} parent=0 // pred_check
    %p464 = pneg %p463
  $region43: #{moe_forward.1} parent=0 // pred_check_branch
    %466 = sbr.rel (%p464) target = $region45
  $region44: #{moe_forward.1} parent=0 // pred_region
    %s467 = scalar_lea.vmem %s8, 8
    %468 = vst.msk [vmem:[%s467] sm:$0xf] %vm160, 0
    %469 = vst.msk [vmem:[%s467 + $0x4] sm:$0xf] %vm160, 0
  $region45: #{moe_forward.1} parent=0 // pred_fallthru
    _
  %p470 = scmp.gt.s32.totalorder %s163, 2
  // Predicated region
  $region46: #{moe_forward.1} parent=0 // pred_check
    %p471 = pneg %p470
  $region47: #{moe_forward.1} parent=0 // pred_check_branch
    %473 = sbr.rel (%p471) target = $region49
  $region48: #{moe_forward.1} parent=0 // pred_region
    %s474 = sld [smem:[#allocation3 + $0x3]]
    %s475 = scalar_lea.vmem %s1, 16
    %v476 = vld [vmem:[%s475] sm:$0xf]
    %v477 = vld [vmem:[%s475 + $0x4] sm:$0xf]
    %s478 = smul.u32 %s474, 4
    %s479 = smul.addr %s478, 4
    %s480 = scalar_lea.vmem %s4, %s479
    %v481 = vld [vmem:[%s480] sm:$0xf]
    %v482 = vld [vmem:[%s480 + $0x4] sm:$0xf]
    %v483 = vld [vmem:[%s480 + $0x8] sm:$0xf]
    %v484 = vld [vmem:[%s480 + $0xc] sm:$0xf]
    %s485 = scalar_lea.vmem %s5, %s474
    %v486 = vld [vmem:[%s485] sm:$0x1]
    %v487 = vunpack.c.l.bf16 %v486
    %v488 = vperm.slane %v487, 0
    %v491 = vunpack.c.l.b16 %v476
    %v492 = vunpack.c.l.b16 %v477
    %v493 = vpack.c.b16 %v492, %v491
    %v498 = vunpack.c.l.b16 %v481
    %v499 = vunpack.c.l.b16 %v482
    %v500 = vunpack.c.l.b16 %v483
    %v501 = vunpack.c.l.b16 %v484
    %v502 = vpack.c.b16 %v499, %v498
    %v503 = vpack.c.b16 %v501, %v500
    %v507 = vsel %vm66, %v493, 0
    %509 = vmatpush.bf16.msra.mxu0 0
    %510 = vmatpush.bf16.msra.mxu0 0
    %511 = vmatpush.bf16.msra.mxu0 0
    %512 = vmatpush.bf16.msra.mxu0 0
    %513 = vmatpush.bf16.msra.mxu0 0
    %514 = vmatpush.bf16.msra.mxu0 0
    %515 = vmatpush.bf16.msra.mxu0 %v503
    %516 = vmatpush.bf16.msra.mxu0 %v502
    %517 = vmatmul.bf16.gmra.mxu0 %v507
    %v518 = vpop.f32.mrf.mxu0
    %v519 = vadd.f32 %v488, %v518
    %v520 = vpop.f32.mrf.mxu0
    %v521 = vadd.f32 %v488, %v520
    %522 = vdwg.mxu0
    %v523 = vmul.f32 %v519, %v519
    %v524 = vmul.f32 %v521, %v521
    %v525 = vmul.f32 %v519, %v523
    %v526 = vmul.f32 %v521, %v524
    %v527 = vmul.f32 %v525, 0.044715
    %v528 = vmul.f32 %v526, 0.044715
    %v529 = vadd.f32 %v519, %v527
    %v530 = vadd.f32 %v521, %v528
    %v531 = vmul.f32 %v529, 0.7978846
    %v532 = vmul.f32 %v530, 0.7978846
    %v533 = vtanh.pop %v531
    %v534 = vtanh.pop %v532
    %v535 = vadd.f32 %v533, 1.0
    %v536 = vadd.f32 %v534, 1.0
    %v537 = vmul.f32 %v535, 0.5
    %v538 = vmul.f32 %v536, 0.5
    %v539 = vmul.f32 %v519, %v537
    %v540 = vmul.f32 %v521, %v538
    %v541 = vpack.c.bf16 %v540, %v539
    %s542 = smul.u32 %s474, 8
    %s543 = smul.addr %s542, 4
    %s544 = scalar_lea.vmem %s6, %s543
    %v545 = vld [vmem:[%s544] sm:$0xf]
    %v546 = vld [vmem:[%s544 + $0x4] sm:$0xf]
    %v547 = vld [vmem:[%s544 + $0x8] sm:$0xf]
    %v548 = vld [vmem:[%s544 + $0xc] sm:$0xf]
    %v549 = vld [vmem:[%s544 + $0x10] sm:$0xf]
    %v550 = vld [vmem:[%s544 + $0x14] sm:$0xf]
    %v551 = vld [vmem:[%s544 + $0x18] sm:$0xf]
    %v552 = vld [vmem:[%s544 + $0x1c] sm:$0xf]
    %s553 = scalar_lea.vmem %s7, %s474
    %v554 = vld [vmem:[%s553] sm:$0x1]
    %v555 = vunpack.c.l.bf16 %v554
    %v556 = vperm.slane %v555, 0
    %v565 = vunpack.c.l.b16 %v545
    %v566 = vunpack.c.l.b16 %v546
    %v567 = vunpack.c.l.b16 %v547
    %v568 = vunpack.c.l.b16 %v548
    %v569 = vunpack.c.l.b16 %v549
    %v570 = vunpack.c.l.b16 %v550
    %v571 = vunpack.c.l.b16 %v551
    %v572 = vunpack.c.l.b16 %v552
    %v573 = vpack.c.b16 %v566, %v565
    %v574 = vpack.c.b16 %v568, %v567
    %v575 = vpack.c.b16 %v570, %v569
    %v576 = vpack.c.b16 %v572, %v571
    %v582 = vsel %vm140, %v541, 0
    %584 = vmatpush.bf16.msra.mxu0 0
    %585 = vmatpush.bf16.msra.mxu0 0
    %586 = vmatpush.bf16.msra.mxu0 0
    %587 = vmatpush.bf16.msra.mxu0 0
    %588 = vmatpush.bf16.msra.mxu0 %v576
    %589 = vmatpush.bf16.msra.mxu0 %v575
    %590 = vmatpush.bf16.msra.mxu0 %v574
    %591 = vmatpush.bf16.msra.mxu0 %v573
    %592 = vmatmul.bf16.gmra.mxu0 %v582
    %v593 = vpop.f32.mrf.mxu0
    %v594 = vadd.f32 %v556, %v593
    %v595 = vpop.f32.mrf.mxu0
    %v596 = vadd.f32 %v556, %v595
    %597 = vdwg.mxu0
    %s598 = scalar_lea.vmem %s2, 32
    %v599 = vld [vmem:[%s598] sm:$0xff]
    %v600 = vld [vmem:[%s598 + $0x8] sm:$0xff]
    %602 = vset.pattern.permute.xlu0 0
    %603 = vperm.xlu0 %602, %v599
    %v604 = vpop.permute.xlu0 %603
    %607 = vset.pattern.permute.xlu0 0
    %608 = vperm.xlu0 %607, %v600
    %v609 = vpop.permute.xlu0 %608
    %v611 = vmul.f32 %v594, %v604
    %v612 = vmul.f32 %v596, %v609
    %v613 = vpack.c.bf16 %v611, %v611
    %v614 = vpack.c.bf16 %v612, %v612
    %s615 = scalar_lea.vmem %s8, 16
    %616 = vst.msk [vmem:[%s615] sm:$0xf] %vm160, %v613
    %617 = vst.msk [vmem:[%s615 + $0x4] sm:$0xf] %vm160, %v614
  $region49: #{moe_forward.1} parent=0 // pred_fallthru
    _
  %p618 = scmp.le.s32.totalorder %s163, 2
  // Predicated region
  $region50: #{moe_forward.1} parent=0 // pred_check
    %p619 = pneg %p618
  $region51: #{moe_forward.1} parent=0 // pred_check_branch
    %621 = sbr.rel (%p619) target = $region53
  $region52: #{moe_forward.1} parent=0 // pred_region
    %s622 = scalar_lea.vmem %s8, 16
    %623 = vst.msk [vmem:[%s622] sm:$0xf] %vm160, 0
    %624 = vst.msk [vmem:[%s622 + $0x4] sm:$0xf] %vm160, 0
  $region53: #{moe_forward.1} parent=0 // pred_fallthru
    _
  %p625 = scmp.gt.s32.totalorder %s163, 3
  // Predicated region
  $region54: #{moe_forward.1} parent=0 // pred_check
    %p626 = pneg %p625
  $region55: #{moe_forward.1} parent=0 // pred_check_branch
    %628 = sbr.rel (%p626) target = $region57
  $region56: #{moe_forward.1} parent=0 // pred_region
    %s629 = sld [smem:[#allocation3 + $0x4]]
    %s630 = scalar_lea.vmem %s1, 24
    %v631 = vld [vmem:[%s630] sm:$0xf]
    %v632 = vld [vmem:[%s630 + $0x4] sm:$0xf]
    %s633 = smul.u32 %s629, 4
    %s634 = smul.addr %s633, 4
    %s635 = scalar_lea.vmem %s4, %s634
    %v636 = vld [vmem:[%s635] sm:$0xf]
    %v637 = vld [vmem:[%s635 + $0x4] sm:$0xf]
    %v638 = vld [vmem:[%s635 + $0x8] sm:$0xf]
    %v639 = vld [vmem:[%s635 + $0xc] sm:$0xf]
    %s640 = scalar_lea.vmem %s5, %s629
    %v641 = vld [vmem:[%s640] sm:$0x1]
    %v642 = vunpack.c.l.bf16 %v641
    %v643 = vperm.slane %v642, 0
    %v646 = vunpack.c.l.b16 %v631
    %v647 = vunpack.c.l.b16 %v632
    %v648 = vpack.c.b16 %v647, %v646
    %v653 = vunpack.c.l.b16 %v636
    %v654 = vunpack.c.l.b16 %v637
    %v655 = vunpack.c.l.b16 %v638
    %v656 = vunpack.c.l.b16 %v639
    %v657 = vpack.c.b16 %v654, %v653
    %v658 = vpack.c.b16 %v656, %v655
    %v662 = vsel %vm66, %v648, 0
    %664 = vmatpush.bf16.msra.mxu0 0
    %665 = vmatpush.bf16.msra.mxu0 0
    %666 = vmatpush.bf16.msra.mxu0 0
    %667 = vmatpush.bf16.msra.mxu0 0
    %668 = vmatpush.bf16.msra.mxu0 0
    %669 = vmatpush.bf16.msra.mxu0 0
    %670 = vmatpush.bf16.msra.mxu0 %v658
    %671 = vmatpush.bf16.msra.mxu0 %v657
    %672 = vmatmul.bf16.gmra.mxu0 %v662
    %v673 = vpop.f32.mrf.mxu0
    %v674 = vadd.f32 %v643, %v673
    %v675 = vpop.f32.mrf.mxu0
    %v676 = vadd.f32 %v643, %v675
    %677 = vdwg.mxu0
    %v678 = vmul.f32 %v674, %v674
    %v679 = vmul.f32 %v676, %v676
    %v680 = vmul.f32 %v674, %v678
    %v681 = vmul.f32 %v676, %v679
    %v682 = vmul.f32 %v680, 0.044715
    %v683 = vmul.f32 %v681, 0.044715
    %v684 = vadd.f32 %v674, %v682
    %v685 = vadd.f32 %v676, %v683
    %v686 = vmul.f32 %v684, 0.7978846
    %v687 = vmul.f32 %v685, 0.7978846
    %v688 = vtanh.pop %v686
    %v689 = vtanh.pop %v687
    %v690 = vadd.f32 %v688, 1.0
    %v691 = vadd.f32 %v689, 1.0
    %v692 = vmul.f32 %v690, 0.5
    %v693 = vmul.f32 %v691, 0.5
    %v694 = vmul.f32 %v674, %v692
    %v695 = vmul.f32 %v676, %v693
    %v696 = vpack.c.bf16 %v695, %v694
    %s697 = smul.u32 %s629, 8
    %s698 = smul.addr %s697, 4
    %s699 = scalar_lea.vmem %s6, %s698
    %v700 = vld [vmem:[%s699] sm:$0xf]
    %v701 = vld [vmem:[%s699 + $0x4] sm:$0xf]
    %v702 = vld [vmem:[%s699 + $0x8] sm:$0xf]
    %v703 = vld [vmem:[%s699 + $0xc] sm:$0xf]
    %v704 = vld [vmem:[%s699 + $0x10] sm:$0xf]
    %v705 = vld [vmem:[%s699 + $0x14] sm:$0xf]
    %v706 = vld [vmem:[%s699 + $0x18] sm:$0xf]
    %v707 = vld [vmem:[%s699 + $0x1c] sm:$0xf]
    %s708 = scalar_lea.vmem %s7, %s629
    %v709 = vld [vmem:[%s708] sm:$0x1]
    %v710 = vunpack.c.l.bf16 %v709
    %v711 = vperm.slane %v710, 0
    %v720 = vunpack.c.l.b16 %v700
    %v721 = vunpack.c.l.b16 %v701
    %v722 = vunpack.c.l.b16 %v702
    %v723 = vunpack.c.l.b16 %v703
    %v724 = vunpack.c.l.b16 %v704
    %v725 = vunpack.c.l.b16 %v705
    %v726 = vunpack.c.l.b16 %v706
    %v727 = vunpack.c.l.b16 %v707
    %v728 = vpack.c.b16 %v721, %v720
    %v729 = vpack.c.b16 %v723, %v722
    %v730 = vpack.c.b16 %v725, %v724
    %v731 = vpack.c.b16 %v727, %v726
    %v737 = vsel %vm140, %v696, 0
    %739 = vmatpush.bf16.msra.mxu0 0
    %740 = vmatpush.bf16.msra.mxu0 0
    %741 = vmatpush.bf16.msra.mxu0 0
    %742 = vmatpush.bf16.msra.mxu0 0
    %743 = vmatpush.bf16.msra.mxu0 %v731
    %744 = vmatpush.bf16.msra.mxu0 %v730
    %745 = vmatpush.bf16.msra.mxu0 %v729
    %746 = vmatpush.bf16.msra.mxu0 %v728
    %747 = vmatmul.bf16.gmra.mxu0 %v737
    %v748 = vpop.f32.mrf.mxu0
    %v749 = vadd.f32 %v711, %v748
    %v750 = vpop.f32.mrf.mxu0
    %v751 = vadd.f32 %v711, %v750
    %752 = vdwg.mxu0
    %s753 = scalar_lea.vmem %s2, 48
    %v754 = vld [vmem:[%s753] sm:$0xff]
    %v755 = vld [vmem:[%s753 + $0x8] sm:$0xff]
    %757 = vset.pattern.permute.xlu0 0
    %758 = vperm.xlu0 %757, %v754
    %v759 = vpop.permute.xlu0 %758
    %762 = vset.pattern.permute.xlu0 0
    %763 = vperm.xlu0 %762, %v755
    %v764 = vpop.permute.xlu0 %763
    %v766 = vmul.f32 %v749, %v759
    %v767 = vmul.f32 %v751, %v764
    %v768 = vpack.c.bf16 %v766, %v766
    %v769 = vpack.c.bf16 %v767, %v767
    %s770 = scalar_lea.vmem %s8, 24
    %771 = vst.msk [vmem:[%s770] sm:$0xf] %vm160, %v768
    %772 = vst.msk [vmem:[%s770 + $0x4] sm:$0xf] %vm160, %v769
  $region57: #{moe_forward.1} parent=0 // pred_fallthru
    _
  %p773 = scmp.le.s32.totalorder %s163, 3
  // Predicated region
  $region58: #{moe_forward.1} parent=0 // pred_check
    %p774 = pneg %p773
  $region59: #{moe_forward.1} parent=0 // pred_check_branch
    %776 = sbr.rel (%p774) target = $region61
  $region60: #{moe_forward.1} parent=0 // pred_region
    %s777 = scalar_lea.vmem %s8, 24
    %778 = vst.msk [vmem:[%s777] sm:$0xf] %vm160, 0
    %779 = vst.msk [vmem:[%s777 + $0x4] sm:$0xf] %vm160, 0
  $region61: #{moe_forward.1} parent=0 // pred_fallthru
    _
  %p780 = scmp.gt.s32.totalorder %s163, 4
  // Predicated region
  $region62: #{moe_forward.1} parent=0 // pred_check
    %p781 = pneg %p780
  $region63: #{moe_forward.1} parent=0 // pred_check_branch
    %783 = sbr.rel (%p781) target = $region65
  $region64: #{moe_forward.1} parent=0 // pred_region
    %s784 = sld [smem:[#allocation3 + $0x5]]
    %s785 = scalar_lea.vmem %s1, 32
    %v786 = vld [vmem:[%s785] sm:$0xf]
    %v787 = vld [vmem:[%s785 + $0x4] sm:$0xf]
    %s788 = smul.u32 %s784, 4
    %s789 = smul.addr %s788, 4
    %s790 = scalar_lea.vmem %s4, %s789
    %v791 = vld [vmem:[%s790] sm:$0xf]
    %v792 = vld [vmem:[%s790 + $0x4] sm:$0xf]
    %v793 = vld [vmem:[%s790 + $0x8] sm:$0xf]
    %v794 = vld [vmem:[%s790 + $0xc] sm:$0xf]
    %s795 = scalar_lea.vmem %s5, %s784
    %v796 = vld [vmem:[%s795] sm:$0x1]
    %v797 = vunpack.c.l.bf16 %v796
    %v798 = vperm.slane %v797, 0
    %v801 = vunpack.c.l.b16 %v786
    %v802 = vunpack.c.l.b16 %v787
    %v803 = vpack.c.b16 %v802, %v801
    %v808 = vunpack.c.l.b16 %v791
    %v809 = vunpack.c.l.b16 %v792
    %v810 = vunpack.c.l.b16 %v793
    %v811 = vunpack.c.l.b16 %v794
    %v812 = vpack.c.b16 %v809, %v808
    %v813 = vpack.c.b16 %v811, %v810
    %v817 = vsel %vm66, %v803, 0
    %819 = vmatpush.bf16.msra.mxu0 0
    %820 = vmatpush.bf16.msra.mxu0 0
    %821 = vmatpush.bf16.msra.mxu0 0
    %822 = vmatpush.bf16.msra.mxu0 0
    %823 = vmatpush.bf16.msra.mxu0 0
    %824 = vmatpush.bf16.msra.mxu0 0
    %825 = vmatpush.bf16.msra.mxu0 %v813
    %826 = vmatpush.bf16.msra.mxu0 %v812
    %827 = vmatmul.bf16.gmra.mxu0 %v817
    %v828 = vpop.f32.mrf.mxu0
    %v829 = vadd.f32 %v798, %v828
    %v830 = vpop.f32.mrf.mxu0
    %v831 = vadd.f32 %v798, %v830
    %832 = vdwg.mxu0
    %v833 = vmul.f32 %v829, %v829
    %v834 = vmul.f32 %v831, %v831
    %v835 = vmul.f32 %v829, %v833
    %v836 = vmul.f32 %v831, %v834
    %v837 = vmul.f32 %v835, 0.044715
    %v838 = vmul.f32 %v836, 0.044715
    %v839 = vadd.f32 %v829, %v837
    %v840 = vadd.f32 %v831, %v838
    %v841 = vmul.f32 %v839, 0.7978846
    %v842 = vmul.f32 %v840, 0.7978846
    %v843 = vtanh.pop %v841
    %v844 = vtanh.pop %v842
    %v845 = vadd.f32 %v843, 1.0
    %v846 = vadd.f32 %v844, 1.0
    %v847 = vmul.f32 %v845, 0.5
    %v848 = vmul.f32 %v846, 0.5
    %v849 = vmul.f32 %v829, %v847
    %v850 = vmul.f32 %v831, %v848
    %v851 = vpack.c.bf16 %v850, %v849
    %s852 = smul.u32 %s784, 8
    %s853 = smul.addr %s852, 4
    %s854 = scalar_lea.vmem %s6, %s853
    %v855 = vld [vmem:[%s854] sm:$0xf]
    %v856 = vld [vmem:[%s854 + $0x4] sm:$0xf]
    %v857 = vld [vmem:[%s854 + $0x8] sm:$0xf]
    %v858 = vld [vmem:[%s854 + $0xc] sm:$0xf]
    %v859 = vld [vmem:[%s854 + $0x10] sm:$0xf]
    %v860 = vld [vmem:[%s854 + $0x14] sm:$0xf]
    %v861 = vld [vmem:[%s854 + $0x18] sm:$0xf]
    %v862 = vld [vmem:[%s854 + $0x1c] sm:$0xf]
    %s863 = scalar_lea.vmem %s7, %s784
    %v864 = vld [vmem:[%s863] sm:$0x1]
    %v865 = vunpack.c.l.bf16 %v864
    %v866 = vperm.slane %v865, 0
    %v875 = vunpack.c.l.b16 %v855
    %v876 = vunpack.c.l.b16 %v856
    %v877 = vunpack.c.l.b16 %v857
    %v878 = vunpack.c.l.b16 %v858
    %v879 = vunpack.c.l.b16 %v859
    %v880 = vunpack.c.l.b16 %v860
    %v881 = vunpack.c.l.b16 %v861
    %v882 = vunpack.c.l.b16 %v862
    %v883 = vpack.c.b16 %v876, %v875
    %v884 = vpack.c.b16 %v878, %v877
    %v885 = vpack.c.b16 %v880, %v879
    %v886 = vpack.c.b16 %v882, %v881
    %v892 = vsel %vm140, %v851, 0
    %894 = vmatpush.bf16.msra.mxu0 0
    %895 = vmatpush.bf16.msra.mxu0 0
    %896 = vmatpush.bf16.msra.mxu0 0
    %897 = vmatpush.bf16.msra.mxu0 0
    %898 = vmatpush.bf16.msra.mxu0 %v886
    %899 = vmatpush.bf16.msra.mxu0 %v885
    %900 = vmatpush.bf16.msra.mxu0 %v884
    %901 = vmatpush.bf16.msra.mxu0 %v883
    %902 = vmatmul.bf16.gmra.mxu0 %v892
    %v903 = vpop.f32.mrf.mxu0
    %v904 = vadd.f32 %v866, %v903
    %v905 = vpop.f32.mrf.mxu0
    %v906 = vadd.f32 %v866, %v905
    %907 = vdwg.mxu0
    %s908 = scalar_lea.vmem %s2, 64
    %v909 = vld [vmem:[%s908] sm:$0xff]
    %v910 = vld [vmem:[%s908 + $0x8] sm:$0xff]
    %912 = vset.pattern.permute.xlu0 0
    %913 = vperm.xlu0 %912, %v909
    %v914 = vpop.permute.xlu0 %913
    %917 = vset.pattern.permute.xlu0 0
    %918 = vperm.xlu0 %917, %v910
    %v919 = vpop.permute.xlu0 %918
    %v921 = vmul.f32 %v904, %v914
    %v922 = vmul.f32 %v906, %v919
    %v923 = vpack.c.bf16 %v921, %v921
    %v924 = vpack.c.bf16 %v922, %v922
    %s925 = scalar_lea.vmem %s8, 32
    %926 = vst.msk [vmem:[%s925] sm:$0xf] %vm160, %v923
    %927 = vst.msk [vmem:[%s925 + $0x4] sm:$0xf] %vm160, %v924
  $region65: #{moe_forward.1} parent=0 // pred_fallthru
    _
  %p928 = scmp.le.s32.totalorder %s163, 4
  // Predicated region
  $region66: #{moe_forward.1} parent=0 // pred_check
    %p929 = pneg %p928
  $region67: #{moe_forward.1} parent=0 // pred_check_branch
    %931 = sbr.rel (%p929) target = $region69
  $region68: #{moe_forward.1} parent=0 // pred_region
    %s932 = scalar_lea.vmem %s8, 32
    %933 = vst.msk [vmem:[%s932] sm:$0xf] %vm160, 0
    %934 = vst.msk [vmem:[%s932 + $0x4] sm:$0xf] %vm160, 0
  $region69: #{moe_forward.1} parent=0 // pred_fallthru
    _
  %p935 = scmp.gt.s32.totalorder %s163, 5
  // Predicated region
  $region70: #{moe_forward.1} parent=0 // pred_check
    %p936 = pneg %p935
  $region71: #{moe_forward.1} parent=0 // pred_check_branch
    %938 = sbr.rel (%p936) target = $region73
  $region72: #{moe_forward.1} parent=0 // pred_region
    %s939 = sld [smem:[#allocation3 + $0x6]]
    %s940 = scalar_lea.vmem %s1, 40
    %v941 = vld [vmem:[%s940] sm:$0xf]
    %v942 = vld [vmem:[%s940 + $0x4] sm:$0xf]
    %s943 = smul.u32 %s939, 4
    %s944 = smul.addr %s943, 4
    %s945 = scalar_lea.vmem %s4, %s944
    %v946 = vld [vmem:[%s945] sm:$0xf]
    %v947 = vld [vmem:[%s945 + $0x4] sm:$0xf]
    %v948 = vld [vmem:[%s945 + $0x8] sm:$0xf]
    %v949 = vld [vmem:[%s945 + $0xc] sm:$0xf]
    %s950 = scalar_lea.vmem %s5, %s939
    %v951 = vld [vmem:[%s950] sm:$0x1]
    %v952 = vunpack.c.l.bf16 %v951
    %v953 = vperm.slane %v952, 0
    %v956 = vunpack.c.l.b16 %v941
    %v957 = vunpack.c.l.b16 %v942
    %v958 = vpack.c.b16 %v957, %v956
    %v963 = vunpack.c.l.b16 %v946
    %v964 = vunpack.c.l.b16 %v947
    %v965 = vunpack.c.l.b16 %v948
    %v966 = vunpack.c.l.b16 %v949
    %v967 = vpack.c.b16 %v964, %v963
    %v968 = vpack.c.b16 %v966, %v965
    %v972 = vsel %vm66, %v958, 0
    %974 = vmatpush.bf16.msra.mxu0 0
    %975 = vmatpush.bf16.msra.mxu0 0
    %976 = vmatpush.bf16.msra.mxu0 0
    %977 = vmatpush.bf16.msra.mxu0 0
    %978 = vmatpush.bf16.msra.mxu0 0
    %979 = vmatpush.bf16.msra.mxu0 0
    %980 = vmatpush.bf16.msra.mxu0 %v968
    %981 = vmatpush.bf16.msra.mxu0 %v967
    %982 = vmatmul.bf16.gmra.mxu0 %v972
    %v983 = vpop.f32.mrf.mxu0
    %v984 = vadd.f32 %v953, %v983
    %v985 = vpop.f32.mrf.mxu0
    %v986 = vadd.f32 %v953, %v985
    %987 = vdwg.mxu0
    %v988 = vmul.f32 %v984, %v984
    %v989 = vmul.f32 %v986, %v986
    %v990 = vmul.f32 %v984, %v988
    %v991 = vmul.f32 %v986, %v989
    %v992 = vmul.f32 %v990, 0.044715
    %v993 = vmul.f32 %v991, 0.044715
    %v994 = vadd.f32 %v984, %v992
    %v995 = vadd.f32 %v986, %v993
    %v996 = vmul.f32 %v994, 0.7978846
    %v997 = vmul.f32 %v995, 0.7978846
    %v998 = vtanh.pop %v996
    %v999 = vtanh.pop %v997
    %v1000 = vadd.f32 %v998, 1.0
    %v1001 = vadd.f32 %v999, 1.0
    %v1002 = vmul.f32 %v1000, 0.5
    %v1003 = vmul.f32 %v1001, 0.5
    %v1004 = vmul.f32 %v984, %v1002
    %v1005 = vmul.f32 %v986, %v1003
    %v1006 = vpack.c.bf16 %v1005, %v1004
    %s1007 = smul.u32 %s939, 8
    %s1008 = smul.addr %s1007, 4
    %s1009 = scalar_lea.vmem %s6, %s1008
    %v1010 = vld [vmem:[%s1009] sm:$0xf]
    %v1011 = vld [vmem:[%s1009 + $0x4] sm:$0xf]
    %v1012 = vld [vmem:[%s1009 + $0x8] sm:$0xf]
    %v1013 = vld [vmem:[%s1009 + $0xc] sm:$0xf]
    %v1014 = vld [vmem:[%s1009 + $0x10] sm:$0xf]
    %v1015 = vld [vmem:[%s1009 + $0x14] sm:$0xf]
    %v1016 = vld [vmem:[%s1009 + $0x18] sm:$0xf]
    %v1017 = vld [vmem:[%s1009 + $0x1c] sm:$0xf]
    %s1018 = scalar_lea.vmem %s7, %s939
    %v1019 = vld [vmem:[%s1018] sm:$0x1]
    %v1020 = vunpack.c.l.bf16 %v1019
    %v1021 = vperm.slane %v1020, 0
    %v1030 = vunpack.c.l.b16 %v1010
    %v1031 = vunpack.c.l.b16 %v1011
    %v1032 = vunpack.c.l.b16 %v1012
    %v1033 = vunpack.c.l.b16 %v1013
    %v1034 = vunpack.c.l.b16 %v1014
    %v1035 = vunpack.c.l.b16 %v1015
    %v1036 = vunpack.c.l.b16 %v1016
    %v1037 = vunpack.c.l.b16 %v1017
    %v1038 = vpack.c.b16 %v1031, %v1030
    %v1039 = vpack.c.b16 %v1033, %v1032
    %v1040 = vpack.c.b16 %v1035, %v1034
    %v1041 = vpack.c.b16 %v1037, %v1036
    %v1047 = vsel %vm140, %v1006, 0
    %1049 = vmatpush.bf16.msra.mxu0 0
    %1050 = vmatpush.bf16.msra.mxu0 0
    %1051 = vmatpush.bf16.msra.mxu0 0
    %1052 = vmatpush.bf16.msra.mxu0 0
    %1053 = vmatpush.bf16.msra.mxu0 %v1041
    %1054 = vmatpush.bf16.msra.mxu0 %v1040
    %1055 = vmatpush.bf16.msra.mxu0 %v1039
    %1056 = vmatpush.bf16.msra.mxu0 %v1038
    %1057 = vmatmul.bf16.gmra.mxu0 %v1047
    %v1058 = vpop.f32.mrf.mxu0
    %v1059 = vadd.f32 %v1021, %v1058
    %v1060 = vpop.f32.mrf.mxu0
    %v1061 = vadd.f32 %v1021, %v1060
    %1062 = vdwg.mxu0
    %s1063 = scalar_lea.vmem %s2, 80
    %v1064 = vld [vmem:[%s1063] sm:$0xff]
    %v1065 = vld [vmem:[%s1063 + $0x8] sm:$0xff]
    %1067 = vset.pattern.permute.xlu0 0
    %1068 = vperm.xlu0 %1067, %v1064
    %v1069 = vpop.permute.xlu0 %1068
    %1072 = vset.pattern.permute.xlu0 0
    %1073 = vperm.xlu0 %1072, %v1065
    %v1074 = vpop.permute.xlu0 %1073
    %v1076 = vmul.f32 %v1059, %v1069
    %v1077 = vmul.f32 %v1061, %v1074
    %v1078 = vpack.c.bf16 %v1076, %v1076
    %v1079 = vpack.c.bf16 %v1077, %v1077
    %s1080 = scalar_lea.vmem %s8, 40
    %1081 = vst.msk [vmem:[%s1080] sm:$0xf] %vm160, %v1078
    %1082 = vst.msk [vmem:[%s1080 + $0x4] sm:$0xf] %vm160, %v1079
  $region73: #{moe_forward.1} parent=0 // pred_fallthru
    _
  %p1083 = scmp.le.s32.totalorder %s163, 5
  // Predicated region
  $region74: #{moe_forward.1} parent=0 // pred_check
    %p1084 = pneg %p1083
  $region75: #{moe_forward.1} parent=0 // pred_check_branch
    %1086 = sbr.rel (%p1084) target = $region77
  $region76: #{moe_forward.1} parent=0 // pred_region
    %s1087 = scalar_lea.vmem %s8, 40
    %1088 = vst.msk [vmem:[%s1087] sm:$0xf] %vm160, 0
    %1089 = vst.msk [vmem:[%s1087 + $0x4] sm:$0xf] %vm160, 0
  $region77: #{moe_forward.1} parent=0 // pred_fallthru
    _
  // Predicated region
  $region78: #{moe_forward.1} parent=0 // pred_check
    _
  $region79: #{moe_forward.1} parent=0 // pred_check_branch
    %1091 = sbr.rel (0) target = $region81
  $region80: #{moe_forward.1} parent=0 // pred_region
    _
  $region81: #{moe_forward.1} parent=0 // pred_fallthru
    _
  // Predicated region
  $region82: #{moe_forward.1} parent=0 // pred_check
    _
  $region83: #{moe_forward.1} parent=0 // pred_check_branch
    %1093 = sbr.rel (0) target = $region85
  $region84: #{moe_forward.1} parent=0 // pred_region
    _
  $region85: #{moe_forward.1} parent=0 // pred_fallthru
    _
  // Predicated region
  $region86: #{moe_forward.1} parent=0 // pred_check
    _
  $region87: #{moe_forward.1} parent=0 // pred_check_branch
    %1095 = sbr.rel (0) target = $region89
  $region88: #{moe_forward.1} parent=0 // pred_region
    _
  $region89: #{moe_forward.1} parent=0 // pred_fallthru
    _
  // Predicated region
  $region90: #{moe_forward.1} parent=0 // pred_check
    _
  $region91: #{moe_forward.1} parent=0 // pred_check_branch
    %1097 = sbr.rel (0) target = $region93
  $region92: #{moe_forward.1} parent=0 // pred_region
    _
  $region93: #{moe_forward.1} parent=0 // pred_fallthru
    _

</llo_original>
